<compile_context>
chip_gen: v5e
topology: v5e:2x2
jax: 0.10.0
libtpu: 0.0.40
codegen_flags: <defaults>
</compile_context>

<pallas_src>
import jax
import jax.numpy as jnp
from jax import lax
from jax.experimental import pallas as pl
from jax.experimental.pallas import tpu as pltpu


def make_disp_unpack_params(w1_hwio, b1, w2_hwio, b2, W):
    """Precompute block-Toeplitz weight slabs ONCE per model (hoisted out of the call path).

    SAME padding, the kx taps and all W output columns are folded into the contraction
    dimension; the 3 ky taps are concatenated along K so each conv is a single MXU matmul:

      w1t : (3*W*Cin,  W*Cmid)  w1t[dy*W*Cin + p*Cin + c, j*Cmid + m] = w1[dy, p-j+1, c, m]
      w2t : (3*W*Cmid, W*Cout)  (zero whenever p-j+1 is outside [0, 3))
      b1t : (1, W*Cmid)         bias replicated per output column
      b2t : (1, W*Cout)
    """
    f32 = jnp.float32
    KH, KW, Cin, Cmid = w1_hwio.shape
    Cout = w2_hwio.shape[-1]
    assert (KH, KW) == (3, 3), "3x3 convs expected"
    assert Cout == 16, "PixelShuffle(4) requires 16 output channels"
    # sel[p, j, dx] = 1 iff UNPADDED input column p feeds output column j through tap dx.
    sel = (jnp.arange(W)[:, None, None]
           == jnp.arange(W)[None, :, None] + jnp.arange(3)[None, None, :] - 1).astype(f32)
    w1t = jnp.einsum("pjd,ydcm->ypcjm", sel, w1_hwio.astype(f32)).reshape(3 * W * Cin, W * Cmid)
    w2t = jnp.einsum("pjd,ydcm->ypcjm", sel, w2_hwio.astype(f32)).reshape(3 * W * Cmid, W * Cout)
    b1t = jnp.tile(b1.astype(f32), W).reshape(1, W * Cmid)
    b2t = jnp.tile(b2.astype(f32), W).reshape(1, W * Cout)
    return w1t, b1t, w2t, b2t


def disp_unpack_forward(x_nchw, w1t, b1t, w2t, b2t):
    """Forward pass of DispUnpack.

    x_nchw : (N, Cin, H, W) float32 (PyTorch NCHW).  Returns (N, 1, 4H, 4W) float32.
    (The PyTorch forward's `output_size` argument is unused by the module, so it is omitted.)
    """
    N, Cin, H, W = x_nchw.shape
    Cmid = w1t.shape[1] // W
    Cout = w2t.shape[1] // W
    K1 = 3 * W * Cin          # conv1 contraction (384 here)
    K2 = W * Cmid             # one ky band of the conv2 contraction (512 here)
    f32 = jnp.float32

    # ---- wrapper-side layout plumbing (free reshapes; input is tiny so 3x im2row bytes is fine)
    x_rows = jnp.transpose(x_nchw, (0, 2, 3, 1)).astype(f32).reshape(N, H, W * Cin)
    x_rows = jnp.pad(x_rows, ((0, 0), (1, 1), (0, 0)))          # row padding only (col pad is in w1t)
    x_im2row = jnp.concatenate(
        [x_rows[:, 0:H, :], x_rows[:, 1:H + 1, :], x_rows[:, 2:H + 2, :]], axis=-1)  # (N, H, 3*W*Cin)

    def kernel(x_ref, w1_ref, b1_ref, w2_ref, b2_ref, y_ref, hband_ref):
        # x_ref:     (1, H, 3*W*Cin)   im2row'd (over ky) input rows for one batch element
        # w1_ref:    (3*W*Cin,  W*Cmid)
        # b1_ref:    (1, W*Cmid)
        # w2_ref:    (3*W*Cmid, W*Cout)
        # b2_ref:    (1, W*Cout)
        # y_ref:     (1, H, W*Cout)    lane-dense pre-pixel-shuffle output
        # hband_ref: (H, 3*W*Cmid)     conv2 im2row scratch (3 ky bands); every element is
        #                              overwritten every grid step (no stale-data dependence).
        zrow = jnp.zeros((1, K2), f32)

        # ---- conv1 (3x3, SAME) + ReLU: ONE MXU matmul, K = 3*W*Cin ----
        h = jnp.dot(x_ref[0], w1_ref[...], preferred_element_type=f32)
        h = jnp.maximum(h + b1_ref[...], 0.0)                    # (H, W*Cmid)

        # ---- scatter hidden rows into the 3 ky bands (boundary rows zeroed) ----
        hband_ref[0:1, 0:K2] = zrow                              # band 0 (row h_out-1), top edge
        hband_ref[1:H, 0:K2] = h[0:H - 1, :]
        hband_ref[:, K2:2 * K2] = h                              # band 1 (row h_out)
        hband_ref[0:H - 1, 2 * K2:3 * K2] = h[1:H, :]            # band 2 (row h_out+1)
        hband_ref[H - 1:H, 2 * K2:3 * K2] = zrow                 # bottom edge

        # ---- conv2 (3x3, SAME) + sigmoid: ONE MXU matmul, K = 3*W*Cmid ----
        acc2 = jnp.dot(hband_ref[...], w2_ref[...], preferred_element_type=f32)
        y_ref[0] = jax.nn.sigmoid(acc2 + b2_ref[...])            # unmasked 256-lane stores

    y_rows = pl.pallas_call(
        kernel,
        out_shape=jax.ShapeDtypeStruct((N, H, W * Cout), f32),
        grid_spec=pltpu.PrefetchScalarGridSpec(
            num_scalar_prefetch=0,
            grid=(N,),                                           # parallel batch axis (v7x: 2 TCs)
            in_specs=[
                pl.BlockSpec((1, H, K1), lambda n: (n, 0, 0)),
                pl.BlockSpec((K1, W * Cmid), lambda n: (0, 0)),  # constant index map -> resident
                pl.BlockSpec((1, W * Cmid), lambda n: (0, 0)),
                pl.BlockSpec((3 * K2, W * Cout), lambda n: (0, 0)),
                pl.BlockSpec((1, W * Cout), lambda n: (0, 0)),
            ],
            out_specs=pl.BlockSpec((1, H, W * Cout), lambda n: (n, 0, 0)),
            scratch_shapes=[pltpu.VMEM((H, 3 * K2), f32)],
        ),
        compiler_params=pltpu.CompilerParams(
            dimension_semantics=("parallel",),
            vmem_limit_bytes=32 * 1024 * 1024,                   # safe on v5e/v6e/v7x
        ),
    )(x_im2row, w1t, b1t, w2t, b2t)

    # PixelShuffle(4): out[n, 0, 4h+i, 4w+j] = y[n, h, w*16 + i*4 + j]
    # (free reshape/transpose on the contiguous lane-dense slab)
    r = 4
    y = y_rows.reshape(N, H, W, r, r)
    y = jnp.transpose(y, (0, 1, 3, 2, 4)).reshape(N, 1, H * r, W * r)
    return y


def _reference_forward(x_nchw, w1_hwio, b1, w2_hwio, b2):
    """Pure-JAX reference (lax.conv) for correctness checking."""
    x = jnp.transpose(x_nchw, (0, 2, 3, 1)).astype(jnp.float32)  # NHWC
    dn = lax.conv_dimension_numbers(x.shape, w1_hwio.shape, ("NHWC", "HWIO", "NHWC"))
    h = lax.conv_general_dilated(x, w1_hwio, (1, 1), "SAME", dimension_numbers=dn) + b1
    h = jnp.maximum(h, 0.0)
    dn2 = lax.conv_dimension_numbers(h.shape, w2_hwio.shape, ("NHWC", "HWIO", "NHWC"))
    y = lax.conv_general_dilated(h, w2_hwio, (1, 1), "SAME", dimension_numbers=dn2) + b2
    y = jax.nn.sigmoid(y)
    N, H, W, _ = y.shape
    r = 4
    y = y.reshape(N, H, W, r, r)
    y = jnp.transpose(y, (0, 1, 3, 2, 4)).reshape(N, 1, H * r, W * r)
    return y


if __name__ == "__main__":
    # Small shapes consistent with the module: DispUnpack(input_dim=8, hidden_dim=32)
    N, Cin, H, W = 2, 8, 16, 16
    Cmid, Cout = 32, 16

    key = jax.random.PRNGKey(0)
    kx, kw1, kb1, kw2, kb2 = jax.random.split(key, 5)

    x = jax.random.normal(kx, (N, Cin, H, W), jnp.float32)
    w1 = 0.1 * jax.random.normal(kw1, (3, 3, Cin, Cmid), jnp.float32)
    b1 = 0.1 * jax.random.normal(kb1, (Cmid,), jnp.float32)
    w2 = 0.1 * jax.random.normal(kw2, (3, 3, Cmid, Cout), jnp.float32)
    b2 = 0.1 * jax.random.normal(kb2, (Cout,), jnp.float32)

    # Block-Toeplitz weight slabs built ONCE per model (not per call).
    params = make_disp_unpack_params(w1, b1, w2, b2, W)

    fwd = jax.jit(disp_unpack_forward)
    out = jax.block_until_ready(fwd(x, *params))

    ref = jax.block_until_ready(_reference_forward(x, w1, b1, w2, b2))
    assert out.shape == (N, 1, 4 * H, 4 * W), out.shape
    assert jnp.allclose(out, ref, atol=5e-5, rtol=1e-5), float(jnp.max(jnp.abs(out - ref)))

    print("KERNEL_OK")
</pallas_src>

<mosaic_0001>
module attributes {stable_mosaic.version = 11 : i64} {
  func.func @kernel(%arg0: i32, %arg1: memref<1x16x384xf32, #tpu.memory_space<vmem>>, %arg2: memref<384x512xf32, #tpu.memory_space<vmem>>, %arg3: memref<1x512xf32, #tpu.memory_space<vmem>>, %arg4: memref<1536x256xf32, #tpu.memory_space<vmem>>, %arg5: memref<1x256xf32, #tpu.memory_space<vmem>>, %arg6: memref<1x16x256xf32, #tpu.memory_space<vmem>>, %arg7: memref<16x1536xf32, #tpu.memory_space<vmem>>) attributes {dimension_semantics = [#tpu.dimension_semantics<parallel>], iteration_bounds = array<i64: 2>, scalar_prefetch = 0 : i64, scratch_operands = 1 : i64, tpu.core_type = #tpu.core_type<tc>, window_params = [{transform_indices = @transform_0, window_bounds = array<i64: 1, 16, 384>}, {pipeline_mode = #tpu.pipeline_mode<synchronous>, transform_indices = @transform_1, window_bounds = array<i64: 384, 512>}, {pipeline_mode = #tpu.pipeline_mode<synchronous>, transform_indices = @transform_2, window_bounds = array<i64: 1, 512>}, {pipeline_mode = #tpu.pipeline_mode<synchronous>, transform_indices = @transform_3, window_bounds = array<i64: 1536, 256>}, {pipeline_mode = #tpu.pipeline_mode<synchronous>, transform_indices = @transform_4, window_bounds = array<i64: 1, 256>}, {transform_indices = @transform_5, window_bounds = array<i64: 1, 16, 256>}]} {
    %cst = arith.constant 0.000000e+00 : f32
    %0 = vector.broadcast %cst : f32 to vector<1x512xf32>
    %c0 = arith.constant 0 : index
    %c0_0 = arith.constant 0 : index
    %c0_1 = arith.constant 0 : index
    %1 = vector.load %arg1[%c0, %c0_0, %c0_1] : memref<1x16x384xf32, #tpu.memory_space<vmem>>, vector<1x16x384xf32>
    %2 = vector.shape_cast %1 : vector<1x16x384xf32> to vector<16x384xf32>
    %c0_2 = arith.constant 0 : index
    %c0_3 = arith.constant 0 : index
    %3 = vector.load %arg2[%c0_2, %c0_3] : memref<384x512xf32, #tpu.memory_space<vmem>>, vector<384x512xf32>
    %cst_4 = arith.constant dense<0.000000e+00> : vector<16x512xf32>
    %4 = tpu.matmul %2, %3, %cst_4 {dimension_numbers = #tpu.dot_dimension_numbers<[1], [0], [0], [1], [0, 0, 1, 1], [], []>} : vector<16x384xf32>, vector<384x512xf32>, vector<16x512xf32> -> vector<16x512xf32>
    %c0_5 = arith.constant 0 : index
    %c0_6 = arith.constant 0 : index
    %5 = vector.load %arg3[%c0_5, %c0_6] : memref<1x512xf32, #tpu.memory_space<vmem>>, vector<1x512xf32>
    %6 = vector.broadcast %5 : vector<1x512xf32> to vector<16x512xf32>
    %7 = arith.addf %4, %6 : vector<16x512xf32>
    %cst_7 = arith.constant 0.000000e+00 : f32
    %8 = vector.broadcast %cst_7 : f32 to vector<16x512xf32>
    %9 = arith.maximumf %7, %8 : vector<16x512xf32>
    %c0_8 = arith.constant 0 : index
    %c0_9 = arith.constant 0 : index
    %10 = vector.load %arg7[%c0_8, %c0_9] : memref<16x1536xf32, #tpu.memory_space<vmem>>, vector<1x512xf32>
    tpu.vector_store %arg7[%c0_8, %c0_9], %0 {strides = array<i32>} : memref<16x1536xf32, #tpu.memory_space<vmem>>, vector<1x512xf32>,
    %11 = vector.extract_strided_slice %9 {offsets = [0, 0], sizes = [15, 512], strides = [1, 1]} : vector<16x512xf32> to vector<15x512xf32>
    %c1 = arith.constant 1 : index
    %c0_10 = arith.constant 0 : index
    %12 = vector.load %arg7[%c1, %c0_10] : memref<16x1536xf32, #tpu.memory_space<vmem>>, vector<15x512xf32>
    tpu.vector_store %arg7[%c1, %c0_10], %11 {strides = array<i32>} : memref<16x1536xf32, #tpu.memory_space<vmem>>, vector<15x512xf32>,
    %c0_11 = arith.constant 0 : index
    %c512 = arith.constant 512 : index
    %13 = vector.load %arg7[%c0_11, %c512] : memref<16x1536xf32, #tpu.memory_space<vmem>>, vector<16x512xf32>
    tpu.vector_store %arg7[%c0_11, %c512], %9 {strides = array<i32>} : memref<16x1536xf32, #tpu.memory_space<vmem>>, vector<16x512xf32>,
    %14 = vector.extract_strided_slice %9 {offsets = [1, 0], sizes = [15, 512], strides = [1, 1]} : vector<16x512xf32> to vector<15x512xf32>
    %c0_12 = arith.constant 0 : index
    %c1024 = arith.constant 1024 : index
    %15 = vector.load %arg7[%c0_12, %c1024] : memref<16x1536xf32, #tpu.memory_space<vmem>>, vector<15x512xf32>
    tpu.vector_store %arg7[%c0_12, %c1024], %14 {strides = array<i32>} : memref<16x1536xf32, #tpu.memory_space<vmem>>, vector<15x512xf32>,
    %c15 = arith.constant 15 : index
    %c1024_13 = arith.constant 1024 : index
    %16 = vector.load %arg7[%c15, %c1024_13] : memref<16x1536xf32, #tpu.memory_space<vmem>>, vector<1x512xf32>
    tpu.vector_store %arg7[%c15, %c1024_13], %0 {strides = array<i32>} : memref<16x1536xf32, #tpu.memory_space<vmem>>, vector<1x512xf32>,
    %c0_14 = arith.constant 0 : index
    %c0_15 = arith.constant 0 : index
    %17 = vector.load %arg7[%c0_14, %c0_15] : memref<16x1536xf32, #tpu.memory_space<vmem>>, vector<16x1536xf32>
    %c0_16 = arith.constant 0 : index
    %c0_17 = arith.constant 0 : index
    %18 = vector.load %arg4[%c0_16, %c0_17] : memref<1536x256xf32, #tpu.memory_space<vmem>>, vector<1536x256xf32>
    %cst_18 = arith.constant dense<0.000000e+00> : vector<16x256xf32>
    %19 = tpu.matmul %17, %18, %cst_18 {dimension_numbers = #tpu.dot_dimension_numbers<[1], [0], [0], [1], [0, 0, 1, 1], [], []>} : vector<16x1536xf32>, vector<1536x256xf32>, vector<16x256xf32> -> vector<16x256xf32>
    %c0_19 = arith.constant 0 : index
    %c0_20 = arith.constant 0 : index
    %20 = vector.load %arg5[%c0_19, %c0_20] : memref<1x256xf32, #tpu.memory_space<vmem>>, vector<1x256xf32>
    %21 = vector.broadcast %20 : vector<1x256xf32> to vector<16x256xf32>
    %22 = arith.addf %19, %21 : vector<16x256xf32>
    %23 = arith.negf %22 : vector<16x256xf32>
    %24 = math.exp %23 : vector<16x256xf32>
    %cst_21 = arith.constant 1.000000e+00 : f32
    %25 = vector.broadcast %cst_21 : f32 to vector<16x256xf32>
    %26 = arith.addf %25, %24 : vector<16x256xf32>
    %27 = arith.divf %25, %26 : vector<16x256xf32>
    %c0_22 = arith.constant 0 : index
    %c0_23 = arith.constant 0 : index
    %c0_24 = arith.constant 0 : index
    %28 = vector.load %arg6[%c0_22, %c0_23, %c0_24] : memref<1x16x256xf32, #tpu.memory_space<vmem>>, vector<1x16x256xf32>
    %29 = vector.shape_cast %28 : vector<1x16x256xf32> to vector<16x256xf32>
    %30 = vector.shape_cast %27 : vector<16x256xf32> to vector<1x16x256xf32>
    tpu.vector_store %arg6[%c0_22, %c0_23, %c0_24], %30 {strides = array<i32>} : memref<1x16x256xf32, #tpu.memory_space<vmem>>, vector<1x16x256xf32>,
    return
  }
  func.func @transform_0(%arg0: i32) -> (i32, i32, i32) {
    %c0_i32 = arith.constant 0 : i32
    %c0_i32_0 = arith.constant 0 : i32
    %c0_i32_1 = arith.constant 0 : i32
    return %arg0, %c0_i32, %c0_i32_0 : i32, i32, i32
  }
  func.func @transform_1(%arg0: i32) -> (i32, i32) {
    %c0_i32 = arith.constant 0 : i32
    %c0_i32_0 = arith.constant 0 : i32
    %c0_i32_1 = arith.constant 0 : i32
    return %c0_i32, %c0_i32_0 : i32, i32
  }
  func.func @transform_2(%arg0: i32) -> (i32, i32) {
    %c0_i32 = arith.constant 0 : i32
    %c0_i32_0 = arith.constant 0 : i32
    %c0_i32_1 = arith.constant 0 : i32
    return %c0_i32, %c0_i32_0 : i32, i32
  }
  func.func @transform_3(%arg0: i32) -> (i32, i32) {
    %c0_i32 = arith.constant 0 : i32
    %c0_i32_0 = arith.constant 0 : i32
    %c0_i32_1 = arith.constant 0 : i32
    return %c0_i32, %c0_i32_0 : i32, i32
  }
  func.func @transform_4(%arg0: i32) -> (i32, i32) {
    %c0_i32 = arith.constant 0 : i32
    %c0_i32_0 = arith.constant 0 : i32
    %c0_i32_1 = arith.constant 0 : i32
    return %c0_i32, %c0_i32_0 : i32, i32
  }
  func.func @transform_5(%arg0: i32) -> (i32, i32, i32) {
    %c0_i32 = arith.constant 0 : i32
    %c0_i32_0 = arith.constant 0 : i32
    %c0_i32_1 = arith.constant 0 : i32
    return %arg0, %c0_i32, %c0_i32_0 : i32, i32, i32
  }
}

</mosaic_0001>

<llo_original>
// kernel: disp_unpack_forward.1
$region0: #{disp_unpack_forward.1}
  #allocation0 [shape = 'u32[]', space=smem, size = 0x4, offset = 0x4, fixed_abs, tag = 'smem constant byte address 0x4 - core index']
  #allocation1 [shape = 'u32[72,128]{1,0:T(1,128)}', space=vmem, size = 0x9000, scoped, tag = 'internal scratch']
  #allocation2 [shape = 'f32[16,1536]{1,0:T(8,128)}', space=vmem, size = 0x18000, scoped, tag = 'scratch operand']
  %s0 = inlined_call_operand.vmem [shape: f32[2,16,384], index: 0, kind: input, shape index: {}]
  %s1 = inlined_call_operand.hbm [shape: f32[384,512], index: 1, kind: input, shape index: {}]
  %s2 = inlined_call_operand.hbm [shape: f32[1,512], index: 2, kind: input, shape index: {}]
  %s3 = inlined_call_operand.hbm [shape: f32[1536,256], index: 3, kind: input, shape index: {}]
  %s4 = inlined_call_operand.hbm [shape: f32[1,256], index: 4, kind: input, shape index: {}]
  %s5 = inlined_call_operand.vmem [shape: f32[2,16,256], index: 5, kind: output, shape index: {}]
  %s6 = sld [smem:[#allocation0]]
  $region69: #{disp_unpack_forward.1} parent=0
    _
  %s8 = ssub.s32 1, %s6
  %s9 = scalar_select 0, %s8, %s6
  $region1: #{disp_unpack_forward.1} parent=0
    #allocation3 [shape = 'u8[786432]{0}', space=vmem, size = 0xc0000, scoped, tag = 'input window, operand 1, single buffered']
    #allocation4 [shape = 's32[2]{0}', space=sflag, size = 0x8, scoped, tag = 'scoped memory for disp_unpack_forward.1']
    #allocation5 [shape = 'u8[2048]{0}', space=vmem, size = 0x800, scoped, tag = 'input window, operand 2, single buffered']
    #allocation6 [shape = 's32[1]{0}', space=sflag, size = 0x4, scoped, tag = 'scoped memory for disp_unpack_forward.1']
    #allocation7 [shape = 'u8[1572864]{0}', space=vmem, size = 0x180000, scoped, tag = 'input window, operand 3, single buffered']
    #allocation8 [shape = 'u8[1024]{0}', space=vmem, size = 0x400, scoped, tag = 'input window, operand 4, single buffered']
    #allocation9 [shape = 's32[1]{0}', space=sflag, size = 0x4, scoped, tag = 'scoped memory for disp_unpack_forward.1']
    %10 = vsyncpa [#allocation4], 0
    %11 = vsyncpa [#allocation6], 0
    %12 = vsyncpa [#allocation9], 0
    loop: start=0, step=1, limit=4
    $region2: #{disp_unpack_forward.1} parent=1 // loop_pre_header
      _
    $region3: #{disp_unpack_forward.1} parent=1 // loop_header
      %s14 = sphi 0, %s18
      %p15 = scmp.ge.s32.totalorder %s14, 4
      %s24 = sphi 0, %s26
      %s27 = sphi 0, %s24
      %s28 = sphi 0, %s27
      %s44 = sphi 0, %s28
      %s48 = sphi 0, %s48
      %s50 = sphi 0, %s48
      %s51 = sphi 0, %s50
      %s65 = sphi 0, %s51
      %s69 = sphi 0, %s69
      %s71 = sphi 0, %s69
      %s72 = sphi 0, %s71
      %s86 = sphi 0, %s72
      %s90 = sphi 0, %s90
      %s92 = sphi 0, %s90
      %s93 = sphi 0, %s92
      %s107 = sphi 0, %s93
      %s111 = sphi 0, %s111
      %s113 = sphi 0, %s111
      %s114 = sphi 0, %s113
      %s128 = sphi 0, %s114
      %s134 = sphi 0, %s136
      %s137 = sphi 0, %s134
      %s138 = sphi 0, %s137
      %s154 = sphi 0, %s138
    $region4: #{disp_unpack_forward.1} parent=1 // loop_header_branch
      %17 = sbr.rel (%p15) target = $region8
    $region5: #{disp_unpack_forward.1} parent=1 // loop_body
      %s19 = ssub.s32 %s14, 1
      %s20 = ssub.s32 %s14, 2
      %s21 = sadd.s32 %s14, 1
      %s22 = ssub.s32 %s14, %s21
      %p23 = scmp.eq.s32.totalorder %s22, 0
      %s25 = sadd.s32 %s24, 1
      %s26 = scalar_select %p23, %s24, %s25
      %p29 = pneg %p23
      %p30 = scmp.eq.s32.totalorder %s14, 1
      %p31 = por %p29, %p30
      %p32 = scmp.ne.s32.totalorder %s24, %s27
      %p33 = scmp.eq.s32.totalorder %s14, 0
      %p34 = por %p32, %p33
      %p35 = scmp.ne.s32.totalorder %s24, %s27
      %p36 = scmp.eq.s32.totalorder %s19, 1
      %p37 = por %p35, %p36
      %p38 = scmp.ne.s32.totalorder %s27, %s28
      %p39 = scmp.eq.s32.totalorder %s19, 0
      %p40 = por %p38, %p39
      %p41 = scmp.ne.s32.totalorder %s27, %s28
      %p42 = scmp.eq.s32.totalorder %s20, 1
      %p43 = por %p41, %p42
      %p45 = scmp.ne.s32.totalorder %s28, %s44
      %p46 = scmp.eq.s32.totalorder %s20, 0
      %p47 = por %p45, %p46
      %s49 = sadd.s32 %s48, 1
      %p52 = scmp.eq.s32.totalorder %s14, 1
      %p53 = scmp.ne.s32.totalorder %s48, %s50
      %p54 = scmp.eq.s32.totalorder %s14, 0
      %p55 = por %p53, %p54
      %p56 = scmp.ne.s32.totalorder %s48, %s50
      %p57 = scmp.eq.s32.totalorder %s19, 1
      %p58 = por %p56, %p57
      %p59 = scmp.ne.s32.totalorder %s50, %s51
      %p60 = scmp.eq.s32.totalorder %s19, 0
      %p61 = por %p59, %p60
      %p62 = scmp.ne.s32.totalorder %s50, %s51
      %p63 = scmp.eq.s32.totalorder %s20, 1
      %p64 = por %p62, %p63
      %p66 = scmp.ne.s32.totalorder %s51, %s65
      %p67 = scmp.eq.s32.totalorder %s20, 0
      %p68 = por %p66, %p67
      %s70 = sadd.s32 %s69, 1
      %p73 = scmp.eq.s32.totalorder %s14, 1
      %p74 = scmp.ne.s32.totalorder %s69, %s71
      %p75 = scmp.eq.s32.totalorder %s14, 0
      %p76 = por %p74, %p75
      %p77 = scmp.ne.s32.totalorder %s69, %s71
      %p78 = scmp.eq.s32.totalorder %s19, 1
      %p79 = por %p77, %p78
      %p80 = scmp.ne.s32.totalorder %s71, %s72
      %p81 = scmp.eq.s32.totalorder %s19, 0
      %p82 = por %p80, %p81
      %p83 = scmp.ne.s32.totalorder %s71, %s72
      %p84 = scmp.eq.s32.totalorder %s20, 1
      %p85 = por %p83, %p84
      %p87 = scmp.ne.s32.totalorder %s72, %s86
      %p88 = scmp.eq.s32.totalorder %s20, 0
      %p89 = por %p87, %p88
      %s91 = sadd.s32 %s90, 1
      %p94 = scmp.eq.s32.totalorder %s14, 1
      %p95 = scmp.ne.s32.totalorder %s90, %s92
      %p96 = scmp.eq.s32.totalorder %s14, 0
      %p97 = por %p95, %p96
      %p98 = scmp.ne.s32.totalorder %s90, %s92
      %p99 = scmp.eq.s32.totalorder %s19, 1
      %p100 = por %p98, %p99
      %p101 = scmp.ne.s32.totalorder %s92, %s93
      %p102 = scmp.eq.s32.totalorder %s19, 0
      %p103 = por %p101, %p102
      %p104 = scmp.ne.s32.totalorder %s92, %s93
      %p105 = scmp.eq.s32.totalorder %s20, 1
      %p106 = por %p104, %p105
      %p108 = scmp.ne.s32.totalorder %s93, %s107
      %p109 = scmp.eq.s32.totalorder %s20, 0
      %p110 = por %p108, %p109
      %s112 = sadd.s32 %s111, 1
      %p115 = scmp.eq.s32.totalorder %s14, 1
      %p116 = scmp.ne.s32.totalorder %s111, %s113
      %p117 = scmp.eq.s32.totalorder %s14, 0
      %p118 = por %p116, %p117
      %p119 = scmp.ne.s32.totalorder %s111, %s113
      %p120 = scmp.eq.s32.totalorder %s19, 1
      %p121 = por %p119, %p120
      %p122 = scmp.ne.s32.totalorder %s113, %s114
      %p123 = scmp.eq.s32.totalorder %s19, 0
      %p124 = por %p122, %p123
      %p125 = scmp.ne.s32.totalorder %s113, %s114
      %p126 = scmp.eq.s32.totalorder %s20, 1
      %p127 = por %p125, %p126
      %p129 = scmp.ne.s32.totalorder %s114, %s128
      %p130 = scmp.eq.s32.totalorder %s20, 0
      %p131 = por %p129, %p130
      %s132 = ssub.s32 %s14, %s21
      %p133 = scmp.eq.s32.totalorder %s132, 0
      %s135 = sadd.s32 %s134, 1
      %s136 = scalar_select %p133, %s134, %s135
      %p139 = pneg %p133
      %p140 = scmp.eq.s32.totalorder %s14, 1
      %p141 = por %p139, %p140
      %p142 = scmp.ne.s32.totalorder %s134, %s137
      %p143 = scmp.eq.s32.totalorder %s14, 0
      %p144 = por %p142, %p143
      %p145 = scmp.ne.s32.totalorder %s134, %s137
      %p146 = scmp.eq.s32.totalorder %s19, 1
      %p147 = por %p145, %p146
      %p148 = scmp.ne.s32.totalorder %s137, %s138
      %p149 = scmp.eq.s32.totalorder %s19, 0
      %p150 = por %p148, %p149
      %p151 = scmp.ne.s32.totalorder %s137, %s138
      %p152 = scmp.eq.s32.totalorder %s20, 1
      %p153 = por %p151, %p152
      %p155 = scmp.ne.s32.totalorder %s138, %s154
      %p156 = scmp.eq.s32.totalorder %s20, 0
      %p157 = por %p155, %p156
      %p158 = scmp.le.s32.totalorder 1, %s14
      %p159 = scmp.lt.s32.totalorder %s14, 3
      %p160 = pnand %p158, %p159
      %p161 = pneg %p160
      // Predicated region
      $region9: #{disp_unpack_forward.1} parent=5 // pred_check
        _
      $region10: #{disp_unpack_forward.1} parent=5 // pred_check_branch
        %163 = sbr.rel (%p160) target = $region12
      $region11: #{disp_unpack_forward.1} parent=5 // pred_region
        %s164 = ssub.s32 %s14, 1
        // Predicated region
        $region13: #{disp_unpack_forward.1} parent=11 // pred_check
          %p165 = pneg %p61
        $region14: #{disp_unpack_forward.1} parent=11 // pred_check_branch
          %167 = sbr.rel (%p165) target = $region16
        $region15: #{disp_unpack_forward.1} parent=11 // pred_region
          %169 = vsyncadd [#allocation4], 0
          %s170 = sshll.u32 %s1, 4
          %s171 = int_to_ptr.hbm [resolvable:$true] %s170
          %s172 = sshll.u32 [#allocation3], 4
          %s173 = int_to_ptr.vmem [resolvable:$true] %s172
          %178 = dma.hbm_to_vmem [thread:$0]  %s171, 24576, %s173, [#allocation4], 512, 512, 32
        $region16: #{disp_unpack_forward.1} parent=11 // pred_fallthru
          _
        // Predicated region
        $region17: #{disp_unpack_forward.1} parent=11 // pred_check
          %p179 = pneg %p82
        $region18: #{disp_unpack_forward.1} parent=11 // pred_check_branch
          %181 = sbr.rel (%p179) target = $region20
        $region19: #{disp_unpack_forward.1} parent=11 // pred_region
          %183 = vsyncadd [#allocation6], 0
          %s185 = sshll.u32 %s2, 4
          %s186 = int_to_ptr.hbm [resolvable:$true] %s185
          %s187 = sshll.u32 [#allocation5], 4
          %s188 = int_to_ptr.vmem [resolvable:$true] %s187
          %190 = dma.hbm_to_vmem [thread:$0]  %s186, 64, %s188, [#allocation6]
        $region20: #{disp_unpack_forward.1} parent=11 // pred_fallthru
          _
        // Predicated region
        $region21: #{disp_unpack_forward.1} parent=11 // pred_check
          %p191 = pneg %p103
        $region22: #{disp_unpack_forward.1} parent=11 // pred_check_branch
          %193 = sbr.rel (%p191) target = $region24
        $region23: #{disp_unpack_forward.1} parent=11 // pred_region
          %195 = vsyncadd [#allocation6], 0
          %s196 = sshll.u32 %s3, 4
          %s197 = int_to_ptr.hbm [resolvable:$true] %s196
          %s198 = sshll.u32 [#allocation7], 4
          %s199 = int_to_ptr.vmem [resolvable:$true] %s198
          %204 = dma.hbm_to_vmem [thread:$0]  %s197, 49152, %s199, [#allocation6], 256, 256, 16
        $region24: #{disp_unpack_forward.1} parent=11 // pred_fallthru
          _
        // Predicated region
        $region25: #{disp_unpack_forward.1} parent=11 // pred_check
          %p205 = pneg %p124
        $region26: #{disp_unpack_forward.1} parent=11 // pred_check_branch
          %207 = sbr.rel (%p205) target = $region28
        $region27: #{disp_unpack_forward.1} parent=11 // pred_region
          %209 = vsyncadd [#allocation9], 0
          %s211 = sshll.u32 %s4, 4
          %s212 = int_to_ptr.hbm [resolvable:$true] %s211
          %s213 = sshll.u32 [#allocation8], 4
          %s214 = int_to_ptr.vmem [resolvable:$true] %s213
          %216 = dma.hbm_to_vmem [thread:$0]  %s212, 32, %s214, [#allocation9]
        $region28: #{disp_unpack_forward.1} parent=11 // pred_fallthru
          _
      $region12: #{disp_unpack_forward.1} parent=5 // pred_fallthru
        _
      %p217 = scmp.lt.s32.totalorder %s14, 2
      // Predicated region
      $region29: #{disp_unpack_forward.1} parent=5 // pred_check
        %p218 = pneg %p217
      $region30: #{disp_unpack_forward.1} parent=5 // pred_check_branch
        %220 = sbr.rel (%p218) target = $region32
      $region31: #{disp_unpack_forward.1} parent=5 // pred_region
        // Predicated region
        $region33: #{disp_unpack_forward.1} parent=31 // pred_check
          %p221 = pneg %p34
        $region34: #{disp_unpack_forward.1} parent=31 // pred_check_branch
          %223 = sbr.rel (%p221) target = $region36
        $region35: #{disp_unpack_forward.1} parent=31 // pred_region
          %p224 = scmp.lt.s32.totalorder %s14, 1
          %s225 = scalar_select %p224, %s14, 1
          %s226 = smul.addr %s225, 6
          %s227 = smul.addr %s226, 8
          %s228 = scalar_lea.vmem %s0, %s227
        $region36: #{disp_unpack_forward.1} parent=31 // pred_fallthru
          _
      $region32: #{disp_unpack_forward.1} parent=5 // pred_fallthru
        _
      %p229 = scmp.le.s32.totalorder 1, %s14
      %p230 = scmp.lt.s32.totalorder %s14, 3
      %p231 = pnand %p229, %p230
      %p232 = pneg %p231
      // Predicated region
      $region37: #{disp_unpack_forward.1} parent=5 // pred_check
        _
      $region38: #{disp_unpack_forward.1} parent=5 // pred_check_branch
        %234 = sbr.rel (%p231) target = $region40
      $region39: #{disp_unpack_forward.1} parent=5 // pred_region
        %s235 = ssub.s32 %s14, 1
        // Predicated region
        $region41: #{disp_unpack_forward.1} parent=39 // pred_check
          %p236 = pneg %p61
        $region42: #{disp_unpack_forward.1} parent=39 // pred_check_branch
          %238 = sbr.rel (%p236) target = $region44
        $region43: #{disp_unpack_forward.1} parent=39 // pred_region
          %240 = dma.done [#allocation4], 24576
        $region44: #{disp_unpack_forward.1} parent=39 // pred_fallthru
          _
        // Predicated region
        $region45: #{disp_unpack_forward.1} parent=39 // pred_check
          %p241 = pneg %p82
        $region46: #{disp_unpack_forward.1} parent=39 // pred_check_branch
          %243 = sbr.rel (%p241) target = $region48
        $region47: #{disp_unpack_forward.1} parent=39 // pred_region
          %245 = dma.done [#allocation6], 64
        $region48: #{disp_unpack_forward.1} parent=39 // pred_fallthru
          _
        // Predicated region
        $region49: #{disp_unpack_forward.1} parent=39 // pred_check
          %p246 = pneg %p103
        $region50: #{disp_unpack_forward.1} parent=39 // pred_check_branch
          %248 = sbr.rel (%p246) target = $region52
        $region51: #{disp_unpack_forward.1} parent=39 // pred_region
          %250 = dma.done [#allocation6], 49152
        $region52: #{disp_unpack_forward.1} parent=39 // pred_fallthru
          _
        // Predicated region
        $region53: #{disp_unpack_forward.1} parent=39 // pred_check
          %p251 = pneg %p124
        $region54: #{disp_unpack_forward.1} parent=39 // pred_check_branch
          %253 = sbr.rel (%p251) target = $region56
        $region55: #{disp_unpack_forward.1} parent=39 // pred_region
          %255 = dma.done [#allocation9], 32
        $region56: #{disp_unpack_forward.1} parent=39 // pred_fallthru
          _
        %p256 = scmp.lt.s32.totalorder %s19, 1
        %s257 = scalar_select %p256, %s19, 1
        %s258 = smul.addr %s257, 6
        %s259 = smul.addr %s258, 8
        %s260 = scalar_lea.vmem %s0, %s259
        %p261 = pneg %p40
        %p262 = pneg %p37
        %p263 = pneg %p61
        %p264 = pneg %p58
        %p265 = pneg %p82
        %p266 = pneg %p79
        %p267 = pneg %p103
        %p268 = pneg %p100
        %p269 = pneg %p124
        %p270 = pneg %p121
        %p271 = pneg %p150
        %p272 = pneg %p147
        %p273 = scmp.lt.s32.totalorder %s19, 1
        %s274 = scalar_select %p273, %s19, 1
        %s275 = smul.addr %s274, 4
        %s276 = smul.addr %s275, 8
        %s277 = scalar_lea.vmem %s5, %s276
        %p278 = scmp.lt.s32.totalorder %s19, 1
        %s279 = scalar_select %p278, %s19, 1
        %s280 = smul.addr %s279, 6
        %s281 = smul.addr %s280, 8
        %s282 = scalar_lea.vmem %s0, %s281
        %p283 = scmp.lt.s32.totalorder %s19, 1
        %s284 = scalar_select %p283, %s19, 1
        %s285 = smul.addr %s284, 4
        %s286 = smul.addr %s285, 8
        %s287 = scalar_lea.vmem %s5, %s286
        %v288 = vld [vmem:[%s282] sm:$0xff]
        %v289 = vld [vmem:[%s282 + $0x8] sm:$0xff]
        %v290 = vld [vmem:[%s282 + $0x10] sm:$0xff]
        %v291 = vld [vmem:[%s282 + $0x18] sm:$0xff]
        %v292 = vld [vmem:[%s282 + $0x20] sm:$0xff]
        %v293 = vld [vmem:[%s282 + $0x28] sm:$0xff]
        %v294 = vld [vmem:[#allocation3] sm:$0xff]
        %v295 = vld [vmem:[#allocation3 + $0x8] sm:$0xff]
        %v296 = vld [vmem:[#allocation3 + $0x10] sm:$0xff]
        %v297 = vld [vmem:[#allocation3 + $0x18] sm:$0xff]
        %v298 = vld [vmem:[#allocation3 + $0x20] sm:$0xff]
        %v299 = vld [vmem:[#allocation3 + $0x28] sm:$0xff]
        %v300 = vld [vmem:[#allocation3 + $0x30] sm:$0xff]
        %v301 = vld [vmem:[#allocation3 + $0x38] sm:$0xff]
        %v302 = vld [vmem:[#allocation3 + $0x40] sm:$0xff]
        %v303 = vld [vmem:[#allocation3 + $0x48] sm:$0xff]
        %v304 = vld [vmem:[#allocation3 + $0x50] sm:$0xff]
        %v305 = vld [vmem:[#allocation3 + $0x58] sm:$0xff]
        %v306 = vld [vmem:[#allocation3 + $0x60] sm:$0xff]
        %v307 = vld [vmem:[#allocation3 + $0x68] sm:$0xff]
        %v308 = vld [vmem:[#allocation3 + $0x70] sm:$0xff]
        %v309 = vld [vmem:[#allocation3 + $0x78] sm:$0xff]
        %v310 = vld [vmem:[#allocation3 + $0x80] sm:$0xff]
        %v311 = vld [vmem:[#allocation3 + $0x88] sm:$0xff]
        %v312 = vld [vmem:[#allocation3 + $0x90] sm:$0xff]
        %v313 = vld [vmem:[#allocation3 + $0x98] sm:$0xff]
        %v314 = vld [vmem:[#allocation3 + $0xa0] sm:$0xff]
        %v315 = vld [vmem:[#allocation3 + $0xa8] sm:$0xff]
        %v316 = vld [vmem:[#allocation3 + $0xb0] sm:$0xff]
        %v317 = vld [vmem:[#allocation3 + $0xb8] sm:$0xff]
        %v318 = vld [vmem:[#allocation3 + $0xc0] sm:$0xff]
        %v319 = vld [vmem:[#allocation3 + $0xc8] sm:$0xff]
        %v320 = vld [vmem:[#allocation3 + $0xd0] sm:$0xff]
        %v321 = vld [vmem:[#allocation3 + $0xd8] sm:$0xff]
        %v322 = vld [vmem:[#allocation3 + $0xe0] sm:$0xff]
        %v323 = vld [vmem:[#allocation3 + $0xe8] sm:$0xff]
        %v324 = vld [vmem:[#allocation3 + $0xf0] sm:$0xff]
        %v325 = vld [vmem:[#allocation3 + $0xf8] sm:$0xff]
        %v326 = vld [vmem:[#allocation3 + $0x100] sm:$0xff]
        %v327 = vld [vmem:[#allocation3 + $0x108] sm:$0xff]
        %v328 = vld [vmem:[#allocation3 + $0x110] sm:$0xff]
        %v329 = vld [vmem:[#allocation3 + $0x118] sm:$0xff]
        %v330 = vld [vmem:[#allocation3 + $0x120] sm:$0xff]
        %v331 = vld [vmem:[#allocation3 + $0x128] sm:$0xff]
        %v332 = vld [vmem:[#allocation3 + $0x130] sm:$0xff]
        %v333 = vld [vmem:[#allocation3 + $0x138] sm:$0xff]
        %v334 = vld [vmem:[#allocation3 + $0x140] sm:$0xff]
        %v335 = vld [vmem:[#allocation3 + $0x148] sm:$0xff]
        %v336 = vld [vmem:[#allocation3 + $0x150] sm:$0xff]
        %v337 = vld [vmem:[#allocation3 + $0x158] sm:$0xff]
        %v338 = vld [vmem:[#allocation3 + $0x160] sm:$0xff]
        %v339 = vld [vmem:[#allocation3 + $0x168] sm:$0xff]
        %v340 = vld [vmem:[#allocation3 + $0x170] sm:$0xff]
        %v341 = vld [vmem:[#allocation3 + $0x178] sm:$0xff]
        %v342 = vld [vmem:[#allocation3 + $0x180] sm:$0xff]
        %v343 = vld [vmem:[#allocation3 + $0x188] sm:$0xff]
        %v344 = vld [vmem:[#allocation3 + $0x190] sm:$0xff]
        %v345 = vld [vmem:[#allocation3 + $0x198] sm:$0xff]
        %v346 = vld [vmem:[#allocation3 + $0x1a0] sm:$0xff]
        %v347 = vld [vmem:[#allocation3 + $0x1a8] sm:$0xff]
        %v348 = vld [vmem:[#allocation3 + $0x1b0] sm:$0xff]
        %v349 = vld [vmem:[#allocation3 + $0x1b8] sm:$0xff]
        %v350 = vld [vmem:[#allocation3 + $0x1c0] sm:$0xff]
        %v351 = vld [vmem:[#allocation3 + $0x1c8] sm:$0xff]
        %v352 = vld [vmem:[#allocation3 + $0x1d0] sm:$0xff]
        %v353 = vld [vmem:[#allocation3 + $0x1d8] sm:$0xff]
        %v354 = vld [vmem:[#allocation3 + $0x1e0] sm:$0xff]
        %v355 = vld [vmem:[#allocation3 + $0x1e8] sm:$0xff]
        %v356 = vld [vmem:[#allocation3 + $0x1f0] sm:$0xff]
        %v357 = vld [vmem:[#allocation3 + $0x1f8] sm:$0xff]
        %v358 = vld [vmem:[#allocation3 + $0x200] sm:$0xff]
        %v359 = vld [vmem:[#allocation3 + $0x208] sm:$0xff]
        %v360 = vld [vmem:[#allocation3 + $0x210] sm:$0xff]
        %v361 = vld [vmem:[#allocation3 + $0x218] sm:$0xff]
        %v362 = vld [vmem:[#allocation3 + $0x220] sm:$0xff]
        %v363 = vld [vmem:[#allocation3 + $0x228] sm:$0xff]
        %v364 = vld [vmem:[#allocation3 + $0x230] sm:$0xff]
        %v365 = vld [vmem:[#allocation3 + $0x238] sm:$0xff]
        %v366 = vld [vmem:[#allocation3 + $0x240] sm:$0xff]
        %v367 = vld [vmem:[#allocation3 + $0x248] sm:$0xff]
        %v368 = vld [vmem:[#allocation3 + $0x250] sm:$0xff]
        %v369 = vld [vmem:[#allocation3 + $0x258] sm:$0xff]
        %v370 = vld [vmem:[#allocation3 + $0x260] sm:$0xff]
        %v371 = vld [vmem:[#allocation3 + $0x268] sm:$0xff]
        %v372 = vld [vmem:[#allocation3 + $0x270] sm:$0xff]
        %v373 = vld [vmem:[#allocation3 + $0x278] sm:$0xff]
        %v374 = vld [vmem:[#allocation3 + $0x280] sm:$0xff]
        %v375 = vld [vmem:[#allocation3 + $0x288] sm:$0xff]
        %v376 = vld [vmem:[#allocation3 + $0x290] sm:$0xff]
        %v377 = vld [vmem:[#allocation3 + $0x298] sm:$0xff]
        %v378 = vld [vmem:[#allocation3 + $0x2a0] sm:$0xff]
        %v379 = vld [vmem:[#allocation3 + $0x2a8] sm:$0xff]
        %v380 = vld [vmem:[#allocation3 + $0x2b0] sm:$0xff]
        %v381 = vld [vmem:[#allocation3 + $0x2b8] sm:$0xff]
        %v382 = vld [vmem:[#allocation3 + $0x2c0] sm:$0xff]
        %v383 = vld [vmem:[#allocation3 + $0x2c8] sm:$0xff]
        %v384 = vld [vmem:[#allocation3 + $0x2d0] sm:$0xff]
        %v385 = vld [vmem:[#allocation3 + $0x2d8] sm:$0xff]
        %v386 = vld [vmem:[#allocation3 + $0x2e0] sm:$0xff]
        %v387 = vld [vmem:[#allocation3 + $0x2e8] sm:$0xff]
        %v388 = vld [vmem:[#allocation3 + $0x2f0] sm:$0xff]
        %v389 = vld [vmem:[#allocation3 + $0x2f8] sm:$0xff]
        %v390 = vld [vmem:[#allocation3 + $0x300] sm:$0xff]
        %v391 = vld [vmem:[#allocation3 + $0x308] sm:$0xff]
        %v392 = vld [vmem:[#allocation3 + $0x310] sm:$0xff]
        %v393 = vld [vmem:[#allocation3 + $0x318] sm:$0xff]
        %v394 = vld [vmem:[#allocation3 + $0x320] sm:$0xff]
        %v395 = vld [vmem:[#allocation3 + $0x328] sm:$0xff]
        %v396 = vld [vmem:[#allocation3 + $0x330] sm:$0xff]
        %v397 = vld [vmem:[#allocation3 + $0x338] sm:$0xff]
        %v398 = vld [vmem:[#allocation3 + $0x340] sm:$0xff]
        %v399 = vld [vmem:[#allocation3 + $0x348] sm:$0xff]
        %v400 = vld [vmem:[#allocation3 + $0x350] sm:$0xff]
        %v401 = vld [vmem:[#allocation3 + $0x358] sm:$0xff]
        %v402 = vld [vmem:[#allocation3 + $0x360] sm:$0xff]
        %v403 = vld [vmem:[#allocation3 + $0x368] sm:$0xff]
        %v404 = vld [vmem:[#allocation3 + $0x370] sm:$0xff]
        %v405 = vld [vmem:[#allocation3 + $0x378] sm:$0xff]
        %v406 = vld [vmem:[#allocation3 + $0x380] sm:$0xff]
        %v407 = vld [vmem:[#allocation3 + $0x388] sm:$0xff]
        %v408 = vld [vmem:[#allocation3 + $0x390] sm:$0xff]
        %v409 = vld [vmem:[#allocation3 + $0x398] sm:$0xff]
        %v410 = vld [vmem:[#allocation3 + $0x3a0] sm:$0xff]
        %v411 = vld [vmem:[#allocation3 + $0x3a8] sm:$0xff]
        %v412 = vld [vmem:[#allocation3 + $0x3b0] sm:$0xff]
        %v413 = vld [vmem:[#allocation3 + $0x3b8] sm:$0xff]
        %v414 = vld [vmem:[#allocation3 + $0x3c0] sm:$0xff]
        %v415 = vld [vmem:[#allocation3 + $0x3c8] sm:$0xff]
        %v416 = vld [vmem:[#allocation3 + $0x3d0] sm:$0xff]
        %v417 = vld [vmem:[#allocation3 + $0x3d8] sm:$0xff]
        %v418 = vld [vmem:[#allocation3 + $0x3e0] sm:$0xff]
        %v419 = vld [vmem:[#allocation3 + $0x3e8] sm:$0xff]
        %v420 = vld [vmem:[#allocation3 + $0x3f0] sm:$0xff]
        %v421 = vld [vmem:[#allocation3 + $0x3f8] sm:$0xff]
        %v422 = vld [vmem:[#allocation3 + $0x400] sm:$0xff]
        %v423 = vld [vmem:[#allocation3 + $0x408] sm:$0xff]
        %v424 = vld [vmem:[#allocation3 + $0x410] sm:$0xff]
        %v425 = vld [vmem:[#allocation3 + $0x418] sm:$0xff]
        %v426 = vld [vmem:[#allocation3 + $0x420] sm:$0xff]
        %v427 = vld [vmem:[#allocation3 + $0x428] sm:$0xff]
        %v428 = vld [vmem:[#allocation3 + $0x430] sm:$0xff]
        %v429 = vld [vmem:[#allocation3 + $0x438] sm:$0xff]
        %v430 = vld [vmem:[#allocation3 + $0x440] sm:$0xff]
        %v431 = vld [vmem:[#allocation3 + $0x448] sm:$0xff]
        %v432 = vld [vmem:[#allocation3 + $0x450] sm:$0xff]
        %v433 = vld [vmem:[#allocation3 + $0x458] sm:$0xff]
        %v434 = vld [vmem:[#allocation3 + $0x460] sm:$0xff]
        %v435 = vld [vmem:[#allocation3 + $0x468] sm:$0xff]
        %v436 = vld [vmem:[#allocation3 + $0x470] sm:$0xff]
        %v437 = vld [vmem:[#allocation3 + $0x478] sm:$0xff]
        %v438 = vld [vmem:[#allocation3 + $0x480] sm:$0xff]
        %v439 = vld [vmem:[#allocation3 + $0x488] sm:$0xff]
        %v440 = vld [vmem:[#allocation3 + $0x490] sm:$0xff]
        %v441 = vld [vmem:[#allocation3 + $0x498] sm:$0xff]
        %v442 = vld [vmem:[#allocation3 + $0x4a0] sm:$0xff]
        %v443 = vld [vmem:[#allocation3 + $0x4a8] sm:$0xff]
        %v444 = vld [vmem:[#allocation3 + $0x4b0] sm:$0xff]
        %v445 = vld [vmem:[#allocation3 + $0x4b8] sm:$0xff]
        %v446 = vld [vmem:[#allocation3 + $0x4c0] sm:$0xff]
        %v447 = vld [vmem:[#allocation3 + $0x4c8] sm:$0xff]
        %v448 = vld [vmem:[#allocation3 + $0x4d0] sm:$0xff]
        %v449 = vld [vmem:[#allocation3 + $0x4d8] sm:$0xff]
        %v450 = vld [vmem:[#allocation3 + $0x4e0] sm:$0xff]
        %v451 = vld [vmem:[#allocation3 + $0x4e8] sm:$0xff]
        %v452 = vld [vmem:[#allocation3 + $0x4f0] sm:$0xff]
        %v453 = vld [vmem:[#allocation3 + $0x4f8] sm:$0xff]
        %v454 = vld [vmem:[#allocation3 + $0x500] sm:$0xff]
        %v455 = vld [vmem:[#allocation3 + $0x508] sm:$0xff]
        %v456 = vld [vmem:[#allocation3 + $0x510] sm:$0xff]
        %v457 = vld [vmem:[#allocation3 + $0x518] sm:$0xff]
        %v458 = vld [vmem:[#allocation3 + $0x520] sm:$0xff]
        %v459 = vld [vmem:[#allocation3 + $0x528] sm:$0xff]
        %v460 = vld [vmem:[#allocation3 + $0x530] sm:$0xff]
        %v461 = vld [vmem:[#allocation3 + $0x538] sm:$0xff]
        %v462 = vld [vmem:[#allocation3 + $0x540] sm:$0xff]
        %v463 = vld [vmem:[#allocation3 + $0x548] sm:$0xff]
        %v464 = vld [vmem:[#allocation3 + $0x550] sm:$0xff]
        %v465 = vld [vmem:[#allocation3 + $0x558] sm:$0xff]
        %v466 = vld [vmem:[#allocation3 + $0x560] sm:$0xff]
        %v467 = vld [vmem:[#allocation3 + $0x568] sm:$0xff]
        %v468 = vld [vmem:[#allocation3 + $0x570] sm:$0xff]
        %v469 = vld [vmem:[#allocation3 + $0x578] sm:$0xff]
        %v470 = vld [vmem:[#allocation3 + $0x580] sm:$0xff]
        %v471 = vld [vmem:[#allocation3 + $0x588] sm:$0xff]
        %v472 = vld [vmem:[#allocation3 + $0x590] sm:$0xff]
        %v473 = vld [vmem:[#allocation3 + $0x598] sm:$0xff]
        %v474 = vld [vmem:[#allocation3 + $0x5a0] sm:$0xff]
        %v475 = vld [vmem:[#allocation3 + $0x5a8] sm:$0xff]
        %v476 = vld [vmem:[#allocation3 + $0x5b0] sm:$0xff]
        %v477 = vld [vmem:[#allocation3 + $0x5b8] sm:$0xff]
        %v478 = vld [vmem:[#allocation3 + $0x5c0] sm:$0xff]
        %v479 = vld [vmem:[#allocation3 + $0x5c8] sm:$0xff]
        %v480 = vld [vmem:[#allocation3 + $0x5d0] sm:$0xff]
        %v481 = vld [vmem:[#allocation3 + $0x5d8] sm:$0xff]
        %v482 = vld [vmem:[#allocation3 + $0x5e0] sm:$0xff]
        %v483 = vld [vmem:[#allocation3 + $0x5e8] sm:$0xff]
        %v484 = vld [vmem:[#allocation3 + $0x5f0] sm:$0xff]
        %v485 = vld [vmem:[#allocation3 + $0x5f8] sm:$0xff]
        %v486 = vld [vmem:[#allocation5] sm:$0xf]
        %v488 = vperm.slane %v486, 0
        %v489 = vperm.slane %v486, 1
        %v490 = vperm.slane %v486, 2
        %v491 = vperm.slane %v486, 3
        %496 = vmatpush.msra.mxu0 %v354
        %497 = vmatpush.msra.mxu0 %v350
        %498 = vmatpush.msra.mxu0 %v346
        %499 = vmatpush.msra.mxu0 %v342
        %500 = vmatpush.msra.mxu0 %v338
        %501 = vmatpush.msra.mxu0 %v334
        %502 = vmatpush.msra.mxu0 %v330
        %503 = vmatpush.msra.mxu0 %v326
        %504 = vmatpush.msra.mxu0 %v322
        %505 = vmatpush.msra.mxu0 %v318
        %506 = vmatpush.msra.mxu0 %v314
        %507 = vmatpush.msra.mxu0 %v310
        %508 = vmatpush.msra.mxu0 %v306
        %509 = vmatpush.msra.mxu0 %v302
        %510 = vmatpush.msra.mxu0 %v298
        %511 = vmatpush.msra.mxu0 %v294
        %512 = vmatmul.f32.gmra.mxu0 %v288
        %v513 = vpop.f32.mrf.mxu0
        %v514 = vadd.f32 %v488, %v513
        %515 = vmatmul.f32.gmra.mxu0 %v291
        %v516 = vpop.f32.mrf.mxu0
        %v517 = vadd.f32 %v488, %v516
        %518 = vdwg.mxu0
        %519 = vmatpush.msra.mxu0 %v418
        %520 = vmatpush.msra.mxu0 %v414
        %521 = vmatpush.msra.mxu0 %v410
        %522 = vmatpush.msra.mxu0 %v406
        %523 = vmatpush.msra.mxu0 %v402
        %524 = vmatpush.msra.mxu0 %v398
        %525 = vmatpush.msra.mxu0 %v394
        %526 = vmatpush.msra.mxu0 %v390
        %527 = vmatpush.msra.mxu0 %v386
        %528 = vmatpush.msra.mxu0 %v382
        %529 = vmatpush.msra.mxu0 %v378
        %530 = vmatpush.msra.mxu0 %v374
        %531 = vmatpush.msra.mxu0 %v370
        %532 = vmatpush.msra.mxu0 %v366
        %533 = vmatpush.msra.mxu0 %v362
        %534 = vmatpush.msra.mxu0 %v358
        %535 = vmatmul.f32.gmra.mxu0 %v289
        %v536 = vpop.f32.mrf.mxu0
        %v537 = vadd.f32 %v514, %v536
        %538 = vmatmul.f32.gmra.mxu0 %v292
        %v539 = vpop.f32.mrf.mxu0
        %v540 = vadd.f32 %v517, %v539
        %541 = vdwg.mxu0
        %542 = vmatpush.msra.mxu0 %v482
        %543 = vmatpush.msra.mxu0 %v478
        %544 = vmatpush.msra.mxu0 %v474
        %545 = vmatpush.msra.mxu0 %v470
        %546 = vmatpush.msra.mxu0 %v466
        %547 = vmatpush.msra.mxu0 %v462
        %548 = vmatpush.msra.mxu0 %v458
        %549 = vmatpush.msra.mxu0 %v454
        %550 = vmatpush.msra.mxu0 %v450
        %551 = vmatpush.msra.mxu0 %v446
        %552 = vmatpush.msra.mxu0 %v442
        %553 = vmatpush.msra.mxu0 %v438
        %554 = vmatpush.msra.mxu0 %v434
        %555 = vmatpush.msra.mxu0 %v430
        %556 = vmatpush.msra.mxu0 %v426
        %557 = vmatpush.msra.mxu0 %v422
        %558 = vmatmul.f32.gmra.mxu0 %v290
        %v559 = vpop.f32.mrf.mxu0
        %v560 = vadd.f32 %v537, %v559
        %561 = vmatmul.f32.gmra.mxu0 %v293
        %v562 = vpop.f32.mrf.mxu0
        %v563 = vadd.f32 %v540, %v562
        %564 = vdwg.mxu0
        %565 = vmatpush.msra.mxu0 %v355
        %566 = vmatpush.msra.mxu0 %v351
        %567 = vmatpush.msra.mxu0 %v347
        %568 = vmatpush.msra.mxu0 %v343
        %569 = vmatpush.msra.mxu0 %v339
        %570 = vmatpush.msra.mxu0 %v335
        %571 = vmatpush.msra.mxu0 %v331
        %572 = vmatpush.msra.mxu0 %v327
        %573 = vmatpush.msra.mxu0 %v323
        %574 = vmatpush.msra.mxu0 %v319
        %575 = vmatpush.msra.mxu0 %v315
        %576 = vmatpush.msra.mxu0 %v311
        %577 = vmatpush.msra.mxu0 %v307
        %578 = vmatpush.msra.mxu0 %v303
        %579 = vmatpush.msra.mxu0 %v299
        %580 = vmatpush.msra.mxu0 %v295
        %581 = vmatmul.f32.gmra.mxu0 %v288
        %v582 = vpop.f32.mrf.mxu0
        %v583 = vadd.f32 %v489, %v582
        %584 = vmatmul.f32.gmra.mxu0 %v291
        %v585 = vpop.f32.mrf.mxu0
        %v586 = vadd.f32 %v489, %v585
        %587 = vdwg.mxu0
        %588 = vmatpush.msra.mxu0 %v419
        %589 = vmatpush.msra.mxu0 %v415
        %590 = vmatpush.msra.mxu0 %v411
        %591 = vmatpush.msra.mxu0 %v407
        %592 = vmatpush.msra.mxu0 %v403
        %593 = vmatpush.msra.mxu0 %v399
        %594 = vmatpush.msra.mxu0 %v395
        %595 = vmatpush.msra.mxu0 %v391
        %596 = vmatpush.msra.mxu0 %v387
        %597 = vmatpush.msra.mxu0 %v383
        %598 = vmatpush.msra.mxu0 %v379
        %599 = vmatpush.msra.mxu0 %v375
        %600 = vmatpush.msra.mxu0 %v371
        %601 = vmatpush.msra.mxu0 %v367
        %602 = vmatpush.msra.mxu0 %v363
        %603 = vmatpush.msra.mxu0 %v359
        %604 = vmatmul.f32.gmra.mxu0 %v289
        %v605 = vpop.f32.mrf.mxu0
        %v606 = vadd.f32 %v583, %v605
        %607 = vmatmul.f32.gmra.mxu0 %v292
        %v608 = vpop.f32.mrf.mxu0
        %v609 = vadd.f32 %v586, %v608
        %610 = vdwg.mxu0
        %611 = vmatpush.msra.mxu0 %v483
        %612 = vmatpush.msra.mxu0 %v479
        %613 = vmatpush.msra.mxu0 %v475
        %614 = vmatpush.msra.mxu0 %v471
        %615 = vmatpush.msra.mxu0 %v467
        %616 = vmatpush.msra.mxu0 %v463
        %617 = vmatpush.msra.mxu0 %v459
        %618 = vmatpush.msra.mxu0 %v455
        %619 = vmatpush.msra.mxu0 %v451
        %620 = vmatpush.msra.mxu0 %v447
        %621 = vmatpush.msra.mxu0 %v443
        %622 = vmatpush.msra.mxu0 %v439
        %623 = vmatpush.msra.mxu0 %v435
        %624 = vmatpush.msra.mxu0 %v431
        %625 = vmatpush.msra.mxu0 %v427
        %626 = vmatpush.msra.mxu0 %v423
        %627 = vmatmul.f32.gmra.mxu0 %v290
        %v628 = vpop.f32.mrf.mxu0
        %v629 = vadd.f32 %v606, %v628
        %630 = vmatmul.f32.gmra.mxu0 %v293
        %v631 = vpop.f32.mrf.mxu0
        %v632 = vadd.f32 %v609, %v631
        %633 = vdwg.mxu0
        %634 = vmatpush.msra.mxu0 %v356
        %635 = vmatpush.msra.mxu0 %v352
        %636 = vmatpush.msra.mxu0 %v348
        %637 = vmatpush.msra.mxu0 %v344
        %638 = vmatpush.msra.mxu0 %v340
        %639 = vmatpush.msra.mxu0 %v336
        %640 = vmatpush.msra.mxu0 %v332
        %641 = vmatpush.msra.mxu0 %v328
        %642 = vmatpush.msra.mxu0 %v324
        %643 = vmatpush.msra.mxu0 %v320
        %644 = vmatpush.msra.mxu0 %v316
        %645 = vmatpush.msra.mxu0 %v312
        %646 = vmatpush.msra.mxu0 %v308
        %647 = vmatpush.msra.mxu0 %v304
        %648 = vmatpush.msra.mxu0 %v300
        %649 = vmatpush.msra.mxu0 %v296
        %650 = vmatmul.f32.gmra.mxu0 %v288
        %v651 = vpop.f32.mrf.mxu0
        %v652 = vadd.f32 %v490, %v651
        %653 = vmatmul.f32.gmra.mxu0 %v291
        %v654 = vpop.f32.mrf.mxu0
        %v655 = vadd.f32 %v490, %v654
        %656 = vdwg.mxu0
        %657 = vmatpush.msra.mxu0 %v420
        %658 = vmatpush.msra.mxu0 %v416
        %659 = vmatpush.msra.mxu0 %v412
        %660 = vmatpush.msra.mxu0 %v408
        %661 = vmatpush.msra.mxu0 %v404
        %662 = vmatpush.msra.mxu0 %v400
        %663 = vmatpush.msra.mxu0 %v396
        %664 = vmatpush.msra.mxu0 %v392
        %665 = vmatpush.msra.mxu0 %v388
        %666 = vmatpush.msra.mxu0 %v384
        %667 = vmatpush.msra.mxu0 %v380
        %668 = vmatpush.msra.mxu0 %v376
        %669 = vmatpush.msra.mxu0 %v372
        %670 = vmatpush.msra.mxu0 %v368
        %671 = vmatpush.msra.mxu0 %v364
        %672 = vmatpush.msra.mxu0 %v360
        %673 = vmatmul.f32.gmra.mxu0 %v289
        %v674 = vpop.f32.mrf.mxu0
        %v675 = vadd.f32 %v652, %v674
        %676 = vmatmul.f32.gmra.mxu0 %v292
        %v677 = vpop.f32.mrf.mxu0
        %v678 = vadd.f32 %v655, %v677
        %679 = vdwg.mxu0
        %680 = vmatpush.msra.mxu0 %v484
        %681 = vmatpush.msra.mxu0 %v480
        %682 = vmatpush.msra.mxu0 %v476
        %683 = vmatpush.msra.mxu0 %v472
        %684 = vmatpush.msra.mxu0 %v468
        %685 = vmatpush.msra.mxu0 %v464
        %686 = vmatpush.msra.mxu0 %v460
        %687 = vmatpush.msra.mxu0 %v456
        %688 = vmatpush.msra.mxu0 %v452
        %689 = vmatpush.msra.mxu0 %v448
        %690 = vmatpush.msra.mxu0 %v444
        %691 = vmatpush.msra.mxu0 %v440
        %692 = vmatpush.msra.mxu0 %v436
        %693 = vmatpush.msra.mxu0 %v432
        %694 = vmatpush.msra.mxu0 %v428
        %695 = vmatpush.msra.mxu0 %v424
        %696 = vmatmul.f32.gmra.mxu0 %v290
        %v697 = vpop.f32.mrf.mxu0
        %v698 = vadd.f32 %v675, %v697
        %699 = vmatmul.f32.gmra.mxu0 %v293
        %v700 = vpop.f32.mrf.mxu0
        %v701 = vadd.f32 %v678, %v700
        %702 = vdwg.mxu0
        %703 = vmatpush.msra.mxu0 %v357
        %704 = vmatpush.msra.mxu0 %v353
        %705 = vmatpush.msra.mxu0 %v349
        %706 = vmatpush.msra.mxu0 %v345
        %707 = vmatpush.msra.mxu0 %v341
        %708 = vmatpush.msra.mxu0 %v337
        %709 = vmatpush.msra.mxu0 %v333
        %710 = vmatpush.msra.mxu0 %v329
        %711 = vmatpush.msra.mxu0 %v325
        %712 = vmatpush.msra.mxu0 %v321
        %713 = vmatpush.msra.mxu0 %v317
        %714 = vmatpush.msra.mxu0 %v313
        %715 = vmatpush.msra.mxu0 %v309
        %716 = vmatpush.msra.mxu0 %v305
        %717 = vmatpush.msra.mxu0 %v301
        %718 = vmatpush.msra.mxu0 %v297
        %719 = vmatmul.f32.gmra.mxu0 %v288
        %v720 = vpop.f32.mrf.mxu0
        %v721 = vadd.f32 %v491, %v720
        %722 = vmatmul.f32.gmra.mxu0 %v291
        %v723 = vpop.f32.mrf.mxu0
        %v724 = vadd.f32 %v491, %v723
        %725 = vdwg.mxu0
        %726 = vmatpush.msra.mxu0 %v421
        %727 = vmatpush.msra.mxu0 %v417
        %728 = vmatpush.msra.mxu0 %v413
        %729 = vmatpush.msra.mxu0 %v409
        %730 = vmatpush.msra.mxu0 %v405
        %731 = vmatpush.msra.mxu0 %v401
        %732 = vmatpush.msra.mxu0 %v397
        %733 = vmatpush.msra.mxu0 %v393
        %734 = vmatpush.msra.mxu0 %v389
        %735 = vmatpush.msra.mxu0 %v385
        %736 = vmatpush.msra.mxu0 %v381
        %737 = vmatpush.msra.mxu0 %v377
        %738 = vmatpush.msra.mxu0 %v373
        %739 = vmatpush.msra.mxu0 %v369
        %740 = vmatpush.msra.mxu0 %v365
        %741 = vmatpush.msra.mxu0 %v361
        %742 = vmatmul.f32.gmra.mxu0 %v289
        %v743 = vpop.f32.mrf.mxu0
        %v744 = vadd.f32 %v721, %v743
        %745 = vmatmul.f32.gmra.mxu0 %v292
        %v746 = vpop.f32.mrf.mxu0
        %v747 = vadd.f32 %v724, %v746
        %748 = vdwg.mxu0
        %749 = vmatpush.msra.mxu0 %v485
        %750 = vmatpush.msra.mxu0 %v481
        %751 = vmatpush.msra.mxu0 %v477
        %752 = vmatpush.msra.mxu0 %v473
        %753 = vmatpush.msra.mxu0 %v469
        %754 = vmatpush.msra.mxu0 %v465
        %755 = vmatpush.msra.mxu0 %v461
        %756 = vmatpush.msra.mxu0 %v457
        %757 = vmatpush.msra.mxu0 %v453
        %758 = vmatpush.msra.mxu0 %v449
        %759 = vmatpush.msra.mxu0 %v445
        %760 = vmatpush.msra.mxu0 %v441
        %761 = vmatpush.msra.mxu0 %v437
        %762 = vmatpush.msra.mxu0 %v433
        %763 = vmatpush.msra.mxu0 %v429
        %764 = vmatpush.msra.mxu0 %v425
        %765 = vmatmul.f32.gmra.mxu0 %v290
        %v766 = vpop.f32.mrf.mxu0
        %v767 = vadd.f32 %v744, %v766
        %768 = vmatmul.f32.gmra.mxu0 %v293
        %v769 = vpop.f32.mrf.mxu0
        %v770 = vadd.f32 %v747, %v769
        %771 = vdwg.mxu0
        %v772 = vmax.f32 %v560, 0.0
        %v773 = vmax.f32 %v629, 0.0
        %v774 = vmax.f32 %v698, 0.0
        %v775 = vmax.f32 %v767, 0.0
        %v776 = vmax.f32 %v563, 0.0
        %v777 = vmax.f32 %v632, 0.0
        %v778 = vmax.f32 %v701, 0.0
        %v779 = vmax.f32 %v770, 0.0
        %v780 = vlaneseq
        %vm781 = vcmp.ge.s32.totalorder %v780, 0
        %vm782 = vcmp.lt.s32.totalorder %v780, 512
        %vm783 = vmand %vm781, %vm782
        %784 = vst.msk [vmem:[#allocation2] ss:$8 sm:$0xf] %vm783, 0.0
        %785 = vst.msk [vmem:[#allocation2] ss:$8 sm:$0x0] %vm783, 0.0
        %vm794 = vcmask 1040384
        %v795 = vrot.slane %v772, 7
        %v796 = vrot.slane %v773, 7
        %v797 = vrot.slane %v774, 7
        %v798 = vrot.slane %v775, 7
        %v799 = vrot.slane %v776, 7
        %v800 = vsel %vm794, %v795, %v799
        %v801 = vrot.slane %v777, 7
        %v802 = vsel %vm794, %v796, %v801
        %v803 = vrot.slane %v778, 7
        %v804 = vsel %vm794, %v797, %v803
        %v805 = vrot.slane %v779, 7
        %v806 = vsel %vm794, %v798, %v805
        %815 = vst [vmem:[#allocation2] sm:$0xfe] %v795
        %816 = vst [vmem:[#allocation2 + $0x8] sm:$0xfe] %v796
        %817 = vst [vmem:[#allocation2 + $0x10] sm:$0xfe] %v797
        %818 = vst [vmem:[#allocation2 + $0x18] sm:$0xfe] %v798
        %819 = vst [vmem:[#allocation2 + $0x60] sm:$0xff] %v800
        %820 = vst [vmem:[#allocation2 + $0x68] sm:$0xff] %v802
        %821 = vst [vmem:[#allocation2 + $0x70] sm:$0xff] %v804
        %822 = vst [vmem:[#allocation2 + $0x78] sm:$0xff] %v806
        %823 = vst [vmem:[#allocation2 + $0x20] sm:$0xff] %v772
        %824 = vst [vmem:[#allocation2 + $0x28] sm:$0xff] %v773
        %825 = vst [vmem:[#allocation2 + $0x30] sm:$0xff] %v774
        %826 = vst [vmem:[#allocation2 + $0x38] sm:$0xff] %v775
        %827 = vst [vmem:[#allocation2 + $0x80] sm:$0xff] %v776
        %828 = vst [vmem:[#allocation2 + $0x88] sm:$0xff] %v777
        %829 = vst [vmem:[#allocation2 + $0x90] sm:$0xff] %v778
        %830 = vst [vmem:[#allocation2 + $0x98] sm:$0xff] %v779
        %vm831 = vcmask 1046528
        %v832 = vrot.slane %v772, 1
        %v833 = vrot.slane %v776, 1
        %v834 = vsel %vm831, %v832, %v833
        %v835 = vrot.slane %v773, 1
        %v836 = vrot.slane %v777, 1
        %v837 = vsel %vm831, %v835, %v836
        %v838 = vrot.slane %v774, 1
        %v839 = vrot.slane %v778, 1
        %v840 = vsel %vm831, %v838, %v839
        %v841 = vrot.slane %v775, 1
        %v842 = vrot.slane %v779, 1
        %v843 = vsel %vm831, %v841, %v842
        %852 = vst [vmem:[#allocation2 + $0x40] sm:$0xff] %v834
        %853 = vst [vmem:[#allocation2 + $0x48] sm:$0xff] %v837
        %854 = vst [vmem:[#allocation2 + $0x50] sm:$0xff] %v840
        %855 = vst [vmem:[#allocation2 + $0x58] sm:$0xff] %v843
        %856 = vst [vmem:[#allocation2 + $0xa0] sm:$0x7f] %v833
        %857 = vst [vmem:[#allocation2 + $0xa8] sm:$0x7f] %v836
        %858 = vst [vmem:[#allocation2 + $0xb0] sm:$0x7f] %v839
        %859 = vst [vmem:[#allocation2 + $0xb8] sm:$0x7f] %v842
        %s860 = scalar_lea.vmem [#allocation2], 167
        %861 = vst.msk [vmem:[%s860] ss:$8 sm:$0xf] %vm783, 0.0
        %862 = vst.msk [vmem:[%s860] ss:$8 sm:$0x0] %vm783, 0.0
        %v863 = vld [vmem:[#allocation2] sm:$0xff]
        %v864 = vld [vmem:[#allocation2 + $0x8] sm:$0xff]
        %v865 = vld [vmem:[#allocation2 + $0x10] sm:$0xff]
        %v866 = vld [vmem:[#allocation2 + $0x18] sm:$0xff]
        %v867 = vld [vmem:[#allocation2 + $0x20] sm:$0xff]
        %v868 = vld [vmem:[#allocation2 + $0x28] sm:$0xff]
        %v869 = vld [vmem:[#allocation2 + $0x30] sm:$0xff]
        %v870 = vld [vmem:[#allocation2 + $0x38] sm:$0xff]
        %v871 = vld [vmem:[#allocation2 + $0x40] sm:$0xff]
        %v872 = vld [vmem:[#allocation2 + $0x48] sm:$0xff]
        %v873 = vld [vmem:[#allocation2 + $0x50] sm:$0xff]
        %v874 = vld [vmem:[#allocation2 + $0x58] sm:$0xff]
        %v875 = vld [vmem:[#allocation2 + $0x60] sm:$0xff]
        %v876 = vld [vmem:[#allocation2 + $0x68] sm:$0xff]
        %v877 = vld [vmem:[#allocation2 + $0x70] sm:$0xff]
        %v878 = vld [vmem:[#allocation2 + $0x78] sm:$0xff]
        %v879 = vld [vmem:[#allocation2 + $0x80] sm:$0xff]
        %v880 = vld [vmem:[#allocation2 + $0x88] sm:$0xff]
        %v881 = vld [vmem:[#allocation2 + $0x90] sm:$0xff]
        %v882 = vld [vmem:[#allocation2 + $0x98] sm:$0xff]
        %v883 = vld [vmem:[#allocation2 + $0xa0] sm:$0xff]
        %v884 = vld [vmem:[#allocation2 + $0xa8] sm:$0xff]
        %v885 = vld [vmem:[#allocation2 + $0xb0] sm:$0xff]
        %v886 = vld [vmem:[#allocation2 + $0xb8] sm:$0xff]
        %v887 = vld [vmem:[#allocation7] sm:$0xff]
        %v888 = vld [vmem:[#allocation7 + $0x8] sm:$0xff]
        %v889 = vld [vmem:[#allocation7 + $0x10] sm:$0xff]
        %v890 = vld [vmem:[#allocation7 + $0x18] sm:$0xff]
        %v891 = vld [vmem:[#allocation7 + $0x20] sm:$0xff]
        %v892 = vld [vmem:[#allocation7 + $0x28] sm:$0xff]
        %v893 = vld [vmem:[#allocation7 + $0x30] sm:$0xff]
        %v894 = vld [vmem:[#allocation7 + $0x38] sm:$0xff]
        %v895 = vld [vmem:[#allocation7 + $0x40] sm:$0xff]
        %v896 = vld [vmem:[#allocation7 + $0x48] sm:$0xff]
        %v897 = vld [vmem:[#allocation7 + $0x50] sm:$0xff]
        %v898 = vld [vmem:[#allocation7 + $0x58] sm:$0xff]
        %v899 = vld [vmem:[#allocation7 + $0x60] sm:$0xff]
        %v900 = vld [vmem:[#allocation7 + $0x68] sm:$0xff]
        %v901 = vld [vmem:[#allocation7 + $0x70] sm:$0xff]
        %v902 = vld [vmem:[#allocation7 + $0x78] sm:$0xff]
        %v903 = vld [vmem:[#allocation7 + $0x80] sm:$0xff]
        %v904 = vld [vmem:[#allocation7 + $0x88] sm:$0xff]
        %v905 = vld [vmem:[#allocation7 + $0x90] sm:$0xff]
        %v906 = vld [vmem:[#allocation7 + $0x98] sm:$0xff]
        %v907 = vld [vmem:[#allocation7 + $0xa0] sm:$0xff]
        %v908 = vld [vmem:[#allocation7 + $0xa8] sm:$0xff]
        %v909 = vld [vmem:[#allocation7 + $0xb0] sm:$0xff]
        %v910 = vld [vmem:[#allocation7 + $0xb8] sm:$0xff]
        %v911 = vld [vmem:[#allocation7 + $0xc0] sm:$0xff]
        %v912 = vld [vmem:[#allocation7 + $0xc8] sm:$0xff]
        %v913 = vld [vmem:[#allocation7 + $0xd0] sm:$0xff]
        %v914 = vld [vmem:[#allocation7 + $0xd8] sm:$0xff]
        %v915 = vld [vmem:[#allocation7 + $0xe0] sm:$0xff]
        %v916 = vld [vmem:[#allocation7 + $0xe8] sm:$0xff]
        %v917 = vld [vmem:[#allocation7 + $0xf0] sm:$0xff]
        %v918 = vld [vmem:[#allocation7 + $0xf8] sm:$0xff]
        %v919 = vld [vmem:[#allocation7 + $0x100] sm:$0xff]
        %v920 = vld [vmem:[#allocation7 + $0x108] sm:$0xff]
        %v921 = vld [vmem:[#allocation7 + $0x110] sm:$0xff]
        %v922 = vld [vmem:[#allocation7 + $0x118] sm:$0xff]
        %v923 = vld [vmem:[#allocation7 + $0x120] sm:$0xff]
        %v924 = vld [vmem:[#allocation7 + $0x128] sm:$0xff]
        %v925 = vld [vmem:[#allocation7 + $0x130] sm:$0xff]
        %v926 = vld [vmem:[#allocation7 + $0x138] sm:$0xff]
        %v927 = vld [vmem:[#allocation7 + $0x140] sm:$0xff]
        %v928 = vld [vmem:[#allocation7 + $0x148] sm:$0xff]
        %v929 = vld [vmem:[#allocation7 + $0x150] sm:$0xff]
        %v930 = vld [vmem:[#allocation7 + $0x158] sm:$0xff]
        %v931 = vld [vmem:[#allocation7 + $0x160] sm:$0xff]
        %v932 = vld [vmem:[#allocation7 + $0x168] sm:$0xff]
        %v933 = vld [vmem:[#allocation7 + $0x170] sm:$0xff]
        %v934 = vld [vmem:[#allocation7 + $0x178] sm:$0xff]
        %v935 = vld [vmem:[#allocation7 + $0x180] sm:$0xff]
        %v936 = vld [vmem:[#allocation7 + $0x188] sm:$0xff]
        %v937 = vld [vmem:[#allocation7 + $0x190] sm:$0xff]
        %v938 = vld [vmem:[#allocation7 + $0x198] sm:$0xff]
        %v939 = vld [vmem:[#allocation7 + $0x1a0] sm:$0xff]
        %v940 = vld [vmem:[#allocation7 + $0x1a8] sm:$0xff]
        %v941 = vld [vmem:[#allocation7 + $0x1b0] sm:$0xff]
        %v942 = vld [vmem:[#allocation7 + $0x1b8] sm:$0xff]
        %v943 = vld [vmem:[#allocation7 + $0x1c0] sm:$0xff]
        %v944 = vld [vmem:[#allocation7 + $0x1c8] sm:$0xff]
        %v945 = vld [vmem:[#allocation7 + $0x1d0] sm:$0xff]
        %v946 = vld [vmem:[#allocation7 + $0x1d8] sm:$0xff]
        %v947 = vld [vmem:[#allocation7 + $0x1e0] sm:$0xff]
        %v948 = vld [vmem:[#allocation7 + $0x1e8] sm:$0xff]
        %v949 = vld [vmem:[#allocation7 + $0x1f0] sm:$0xff]
        %v950 = vld [vmem:[#allocation7 + $0x1f8] sm:$0xff]
        %v951 = vld [vmem:[#allocation7 + $0x200] sm:$0xff]
        %v952 = vld [vmem:[#allocation7 + $0x208] sm:$0xff]
        %v953 = vld [vmem:[#allocation7 + $0x210] sm:$0xff]
        %v954 = vld [vmem:[#allocation7 + $0x218] sm:$0xff]
        %v955 = vld [vmem:[#allocation7 + $0x220] sm:$0xff]
        %v956 = vld [vmem:[#allocation7 + $0x228] sm:$0xff]
        %v957 = vld [vmem:[#allocation7 + $0x230] sm:$0xff]
        %v958 = vld [vmem:[#allocation7 + $0x238] sm:$0xff]
        %v959 = vld [vmem:[#allocation7 + $0x240] sm:$0xff]
        %v960 = vld [vmem:[#allocation7 + $0x248] sm:$0xff]
        %v961 = vld [vmem:[#allocation7 + $0x250] sm:$0xff]
        %v962 = vld [vmem:[#allocation7 + $0x258] sm:$0xff]
        %v963 = vld [vmem:[#allocation7 + $0x260] sm:$0xff]
        %v964 = vld [vmem:[#allocation7 + $0x268] sm:$0xff]
        %v965 = vld [vmem:[#allocation7 + $0x270] sm:$0xff]
        %v966 = vld [vmem:[#allocation7 + $0x278] sm:$0xff]
        %v967 = vld [vmem:[#allocation7 + $0x280] sm:$0xff]
        %v968 = vld [vmem:[#allocation7 + $0x288] sm:$0xff]
        %v969 = vld [vmem:[#allocation7 + $0x290] sm:$0xff]
        %v970 = vld [vmem:[#allocation7 + $0x298] sm:$0xff]
        %v971 = vld [vmem:[#allocation7 + $0x2a0] sm:$0xff]
        %v972 = vld [vmem:[#allocation7 + $0x2a8] sm:$0xff]
        %v973 = vld [vmem:[#allocation7 + $0x2b0] sm:$0xff]
        %v974 = vld [vmem:[#allocation7 + $0x2b8] sm:$0xff]
        %v975 = vld [vmem:[#allocation7 + $0x2c0] sm:$0xff]
        %v976 = vld [vmem:[#allocation7 + $0x2c8] sm:$0xff]
        %v977 = vld [vmem:[#allocation7 + $0x2d0] sm:$0xff]
        %v978 = vld [vmem:[#allocation7 + $0x2d8] sm:$0xff]
        %v979 = vld [vmem:[#allocation7 + $0x2e0] sm:$0xff]
        %v980 = vld [vmem:[#allocation7 + $0x2e8] sm:$0xff]
        %v981 = vld [vmem:[#allocation7 + $0x2f0] sm:$0xff]
        %v982 = vld [vmem:[#allocation7 + $0x2f8] sm:$0xff]
        %v983 = vld [vmem:[#allocation7 + $0x300] sm:$0xff]
        %v984 = vld [vmem:[#allocation7 + $0x308] sm:$0xff]
        %v985 = vld [vmem:[#allocation7 + $0x310] sm:$0xff]
        %v986 = vld [vmem:[#allocation7 + $0x318] sm:$0xff]
        %v987 = vld [vmem:[#allocation7 + $0x320] sm:$0xff]
        %v988 = vld [vmem:[#allocation7 + $0x328] sm:$0xff]
        %v989 = vld [vmem:[#allocation7 + $0x330] sm:$0xff]
        %v990 = vld [vmem:[#allocation7 + $0x338] sm:$0xff]
        %v991 = vld [vmem:[#allocation7 + $0x340] sm:$0xff]
        %v992 = vld [vmem:[#allocation7 + $0x348] sm:$0xff]
        %v993 = vld [vmem:[#allocation7 + $0x350] sm:$0xff]
        %v994 = vld [vmem:[#allocation7 + $0x358] sm:$0xff]
        %v995 = vld [vmem:[#allocation7 + $0x360] sm:$0xff]
        %v996 = vld [vmem:[#allocation7 + $0x368] sm:$0xff]
        %v997 = vld [vmem:[#allocation7 + $0x370] sm:$0xff]
        %v998 = vld [vmem:[#allocation7 + $0x378] sm:$0xff]
        %v999 = vld [vmem:[#allocation7 + $0x380] sm:$0xff]
        %v1000 = vld [vmem:[#allocation7 + $0x388] sm:$0xff]
        %v1001 = vld [vmem:[#allocation7 + $0x390] sm:$0xff]
        %v1002 = vld [vmem:[#allocation7 + $0x398] sm:$0xff]
        %v1003 = vld [vmem:[#allocation7 + $0x3a0] sm:$0xff]
        %v1004 = vld [vmem:[#allocation7 + $0x3a8] sm:$0xff]
        %v1005 = vld [vmem:[#allocation7 + $0x3b0] sm:$0xff]
        %v1006 = vld [vmem:[#allocation7 + $0x3b8] sm:$0xff]
        %v1007 = vld [vmem:[#allocation7 + $0x3c0] sm:$0xff]
        %v1008 = vld [vmem:[#allocation7 + $0x3c8] sm:$0xff]
        %v1009 = vld [vmem:[#allocation7 + $0x3d0] sm:$0xff]
        %v1010 = vld [vmem:[#allocation7 + $0x3d8] sm:$0xff]
        %v1011 = vld [vmem:[#allocation7 + $0x3e0] sm:$0xff]
        %v1012 = vld [vmem:[#allocation7 + $0x3e8] sm:$0xff]
        %v1013 = vld [vmem:[#allocation7 + $0x3f0] sm:$0xff]
        %v1014 = vld [vmem:[#allocation7 + $0x3f8] sm:$0xff]
        %v1015 = vld [vmem:[#allocation7 + $0x400] sm:$0xff]
        %v1016 = vld [vmem:[#allocation7 + $0x408] sm:$0xff]
        %v1017 = vld [vmem:[#allocation7 + $0x410] sm:$0xff]
        %v1018 = vld [vmem:[#allocation7 + $0x418] sm:$0xff]
        %v1019 = vld [vmem:[#allocation7 + $0x420] sm:$0xff]
        %v1020 = vld [vmem:[#allocation7 + $0x428] sm:$0xff]
        %v1021 = vld [vmem:[#allocation7 + $0x430] sm:$0xff]
        %v1022 = vld [vmem:[#allocation7 + $0x438] sm:$0xff]
        %v1023 = vld [vmem:[#allocation7 + $0x440] sm:$0xff]
        %v1024 = vld [vmem:[#allocation7 + $0x448] sm:$0xff]
        %v1025 = vld [vmem:[#allocation7 + $0x450] sm:$0xff]
        %v1026 = vld [vmem:[#allocation7 + $0x458] sm:$0xff]
        %v1027 = vld [vmem:[#allocation7 + $0x460] sm:$0xff]
        %v1028 = vld [vmem:[#allocation7 + $0x468] sm:$0xff]
        %v1029 = vld [vmem:[#allocation7 + $0x470] sm:$0xff]
        %v1030 = vld [vmem:[#allocation7 + $0x478] sm:$0xff]
        %v1031 = vld [vmem:[#allocation7 + $0x480] sm:$0xff]
        %v1032 = vld [vmem:[#allocation7 + $0x488] sm:$0xff]
        %v1033 = vld [vmem:[#allocation7 + $0x490] sm:$0xff]
        %v1034 = vld [vmem:[#allocation7 + $0x498] sm:$0xff]
        %v1035 = vld [vmem:[#allocation7 + $0x4a0] sm:$0xff]
        %v1036 = vld [vmem:[#allocation7 + $0x4a8] sm:$0xff]
        %v1037 = vld [vmem:[#allocation7 + $0x4b0] sm:$0xff]
        %v1038 = vld [vmem:[#allocation7 + $0x4b8] sm:$0xff]
        %v1039 = vld [vmem:[#allocation7 + $0x4c0] sm:$0xff]
        %v1040 = vld [vmem:[#allocation7 + $0x4c8] sm:$0xff]
        %v1041 = vld [vmem:[#allocation7 + $0x4d0] sm:$0xff]
        %v1042 = vld [vmem:[#allocation7 + $0x4d8] sm:$0xff]
        %v1043 = vld [vmem:[#allocation7 + $0x4e0] sm:$0xff]
        %v1044 = vld [vmem:[#allocation7 + $0x4e8] sm:$0xff]
        %v1045 = vld [vmem:[#allocation7 + $0x4f0] sm:$0xff]
        %v1046 = vld [vmem:[#allocation7 + $0x4f8] sm:$0xff]
        %v1047 = vld [vmem:[#allocation7 + $0x500] sm:$0xff]
        %v1048 = vld [vmem:[#allocation7 + $0x508] sm:$0xff]
        %v1049 = vld [vmem:[#allocation7 + $0x510] sm:$0xff]
        %v1050 = vld [vmem:[#allocation7 + $0x518] sm:$0xff]
        %v1051 = vld [vmem:[#allocation7 + $0x520] sm:$0xff]
        %v1052 = vld [vmem:[#allocation7 + $0x528] sm:$0xff]
        %v1053 = vld [vmem:[#allocation7 + $0x530] sm:$0xff]
        %v1054 = vld [vmem:[#allocation7 + $0x538] sm:$0xff]
        %v1055 = vld [vmem:[#allocation7 + $0x540] sm:$0xff]
        %v1056 = vld [vmem:[#allocation7 + $0x548] sm:$0xff]
        %v1057 = vld [vmem:[#allocation7 + $0x550] sm:$0xff]
        %v1058 = vld [vmem:[#allocation7 + $0x558] sm:$0xff]
        %v1059 = vld [vmem:[#allocation7 + $0x560] sm:$0xff]
        %v1060 = vld [vmem:[#allocation7 + $0x568] sm:$0xff]
        %v1061 = vld [vmem:[#allocation7 + $0x570] sm:$0xff]
        %v1062 = vld [vmem:[#allocation7 + $0x578] sm:$0xff]
        %v1063 = vld [vmem:[#allocation7 + $0x580] sm:$0xff]
        %v1064 = vld [vmem:[#allocation7 + $0x588] sm:$0xff]
        %v1065 = vld [vmem:[#allocation7 + $0x590] sm:$0xff]
        %v1066 = vld [vmem:[#allocation7 + $0x598] sm:$0xff]
        %v1067 = vld [vmem:[#allocation7 + $0x5a0] sm:$0xff]
        %v1068 = vld [vmem:[#allocation7 + $0x5a8] sm:$0xff]
        %v1069 = vld [vmem:[#allocation7 + $0x5b0] sm:$0xff]
        %v1070 = vld [vmem:[#allocation7 + $0x5b8] sm:$0xff]
        %v1071 = vld [vmem:[#allocation7 + $0x5c0] sm:$0xff]
        %v1072 = vld [vmem:[#allocation7 + $0x5c8] sm:$0xff]
        %v1073 = vld [vmem:[#allocation7 + $0x5d0] sm:$0xff]
        %v1074 = vld [vmem:[#allocation7 + $0x5d8] sm:$0xff]
        %v1075 = vld [vmem:[#allocation7 + $0x5e0] sm:$0xff]
        %v1076 = vld [vmem:[#allocation7 + $0x5e8] sm:$0xff]
        %v1077 = vld [vmem:[#allocation7 + $0x5f0] sm:$0xff]
        %v1078 = vld [vmem:[#allocation7 + $0x5f8] sm:$0xff]
        %v1079 = vld [vmem:[#allocation7 + $0x600] sm:$0xff]
        %v1080 = vld [vmem:[#allocation7 + $0x608] sm:$0xff]
        %v1081 = vld [vmem:[#allocation7 + $0x610] sm:$0xff]
        %v1082 = vld [vmem:[#allocation7 + $0x618] sm:$0xff]
        %v1083 = vld [vmem:[#allocation7 + $0x620] sm:$0xff]
        %v1084 = vld [vmem:[#allocation7 + $0x628] sm:$0xff]
        %v1085 = vld [vmem:[#allocation7 + $0x630] sm:$0xff]
        %v1086 = vld [vmem:[#allocation7 + $0x638] sm:$0xff]
        %v1087 = vld [vmem:[#allocation7 + $0x640] sm:$0xff]
        %v1088 = vld [vmem:[#allocation7 + $0x648] sm:$0xff]
        %v1089 = vld [vmem:[#allocation7 + $0x650] sm:$0xff]
        %v1090 = vld [vmem:[#allocation7 + $0x658] sm:$0xff]
        %v1091 = vld [vmem:[#allocation7 + $0x660] sm:$0xff]
        %v1092 = vld [vmem:[#allocation7 + $0x668] sm:$0xff]
        %v1093 = vld [vmem:[#allocation7 + $0x670] sm:$0xff]
        %v1094 = vld [vmem:[#allocation7 + $0x678] sm:$0xff]
        %v1095 = vld [vmem:[#allocation7 + $0x680] sm:$0xff]
        %v1096 = vld [vmem:[#allocation7 + $0x688] sm:$0xff]
        %v1097 = vld [vmem:[#allocation7 + $0x690] sm:$0xff]
        %v1098 = vld [vmem:[#allocation7 + $0x698] sm:$0xff]
        %v1099 = vld [vmem:[#allocation7 + $0x6a0] sm:$0xff]
        %v1100 = vld [vmem:[#allocation7 + $0x6a8] sm:$0xff]
        %v1101 = vld [vmem:[#allocation7 + $0x6b0] sm:$0xff]
        %v1102 = vld [vmem:[#allocation7 + $0x6b8] sm:$0xff]
        %v1103 = vld [vmem:[#allocation7 + $0x6c0] sm:$0xff]
        %v1104 = vld [vmem:[#allocation7 + $0x6c8] sm:$0xff]
        %v1105 = vld [vmem:[#allocation7 + $0x6d0] sm:$0xff]
        %v1106 = vld [vmem:[#allocation7 + $0x6d8] sm:$0xff]
        %v1107 = vld [vmem:[#allocation7 + $0x6e0] sm:$0xff]
        %v1108 = vld [vmem:[#allocation7 + $0x6e8] sm:$0xff]
        %v1109 = vld [vmem:[#allocation7 + $0x6f0] sm:$0xff]
        %v1110 = vld [vmem:[#allocation7 + $0x6f8] sm:$0xff]
        %v1111 = vld [vmem:[#allocation7 + $0x700] sm:$0xff]
        %v1112 = vld [vmem:[#allocation7 + $0x708] sm:$0xff]
        %v1113 = vld [vmem:[#allocation7 + $0x710] sm:$0xff]
        %v1114 = vld [vmem:[#allocation7 + $0x718] sm:$0xff]
        %v1115 = vld [vmem:[#allocation7 + $0x720] sm:$0xff]
        %v1116 = vld [vmem:[#allocation7 + $0x728] sm:$0xff]
        %v1117 = vld [vmem:[#allocation7 + $0x730] sm:$0xff]
        %v1118 = vld [vmem:[#allocation7 + $0x738] sm:$0xff]
        %v1119 = vld [vmem:[#allocation7 + $0x740] sm:$0xff]
        %v1120 = vld [vmem:[#allocation7 + $0x748] sm:$0xff]
        %v1121 = vld [vmem:[#allocation7 + $0x750] sm:$0xff]
        %v1122 = vld [vmem:[#allocation7 + $0x758] sm:$0xff]
        %v1123 = vld [vmem:[#allocation7 + $0x760] sm:$0xff]
        %v1124 = vld [vmem:[#allocation7 + $0x768] sm:$0xff]
        %v1125 = vld [vmem:[#allocation7 + $0x770] sm:$0xff]
        %v1126 = vld [vmem:[#allocation7 + $0x778] sm:$0xff]
        %v1127 = vld [vmem:[#allocation7 + $0x780] sm:$0xff]
        %v1128 = vld [vmem:[#allocation7 + $0x788] sm:$0xff]
        %v1129 = vld [vmem:[#allocation7 + $0x790] sm:$0xff]
        %v1130 = vld [vmem:[#allocation7 + $0x798] sm:$0xff]
        %v1131 = vld [vmem:[#allocation7 + $0x7a0] sm:$0xff]
        %v1132 = vld [vmem:[#allocation7 + $0x7a8] sm:$0xff]
        %v1133 = vld [vmem:[#allocation7 + $0x7b0] sm:$0xff]
        %v1134 = vld [vmem:[#allocation7 + $0x7b8] sm:$0xff]
        %v1135 = vld [vmem:[#allocation7 + $0x7c0] sm:$0xff]
        %v1136 = vld [vmem:[#allocation7 + $0x7c8] sm:$0xff]
        %v1137 = vld [vmem:[#allocation7 + $0x7d0] sm:$0xff]
        %v1138 = vld [vmem:[#allocation7 + $0x7d8] sm:$0xff]
        %v1139 = vld [vmem:[#allocation7 + $0x7e0] sm:$0xff]
        %v1140 = vld [vmem:[#allocation7 + $0x7e8] sm:$0xff]
        %v1141 = vld [vmem:[#allocation7 + $0x7f0] sm:$0xff]
        %v1142 = vld [vmem:[#allocation7 + $0x7f8] sm:$0xff]
        %v1143 = vld [vmem:[#allocation7 + $0x800] sm:$0xff]
        %v1144 = vld [vmem:[#allocation7 + $0x808] sm:$0xff]
        %v1145 = vld [vmem:[#allocation7 + $0x810] sm:$0xff]
        %v1146 = vld [vmem:[#allocation7 + $0x818] sm:$0xff]
        %v1147 = vld [vmem:[#allocation7 + $0x820] sm:$0xff]
        %v1148 = vld [vmem:[#allocation7 + $0x828] sm:$0xff]
        %v1149 = vld [vmem:[#allocation7 + $0x830] sm:$0xff]
        %v1150 = vld [vmem:[#allocation7 + $0x838] sm:$0xff]
        %v1151 = vld [vmem:[#allocation7 + $0x840] sm:$0xff]
        %v1152 = vld [vmem:[#allocation7 + $0x848] sm:$0xff]
        %v1153 = vld [vmem:[#allocation7 + $0x850] sm:$0xff]
        %v1154 = vld [vmem:[#allocation7 + $0x858] sm:$0xff]
        %v1155 = vld [vmem:[#allocation7 + $0x860] sm:$0xff]
        %v1156 = vld [vmem:[#allocation7 + $0x868] sm:$0xff]
        %v1157 = vld [vmem:[#allocation7 + $0x870] sm:$0xff]
        %v1158 = vld [vmem:[#allocation7 + $0x878] sm:$0xff]
        %v1159 = vld [vmem:[#allocation7 + $0x880] sm:$0xff]
        %v1160 = vld [vmem:[#allocation7 + $0x888] sm:$0xff]
        %v1161 = vld [vmem:[#allocation7 + $0x890] sm:$0xff]
        %v1162 = vld [vmem:[#allocation7 + $0x898] sm:$0xff]
        %v1163 = vld [vmem:[#allocation7 + $0x8a0] sm:$0xff]
        %v1164 = vld [vmem:[#allocation7 + $0x8a8] sm:$0xff]
        %v1165 = vld [vmem:[#allocation7 + $0x8b0] sm:$0xff]
        %v1166 = vld [vmem:[#allocation7 + $0x8b8] sm:$0xff]
        %v1167 = vld [vmem:[#allocation7 + $0x8c0] sm:$0xff]
        %v1168 = vld [vmem:[#allocation7 + $0x8c8] sm:$0xff]
        %v1169 = vld [vmem:[#allocation7 + $0x8d0] sm:$0xff]
        %v1170 = vld [vmem:[#allocation7 + $0x8d8] sm:$0xff]
        %v1171 = vld [vmem:[#allocation7 + $0x8e0] sm:$0xff]
        %v1172 = vld [vmem:[#allocation7 + $0x8e8] sm:$0xff]
        %v1173 = vld [vmem:[#allocation7 + $0x8f0] sm:$0xff]
        %v1174 = vld [vmem:[#allocation7 + $0x8f8] sm:$0xff]
        %v1175 = vld [vmem:[#allocation7 + $0x900] sm:$0xff]
        %v1176 = vld [vmem:[#allocation7 + $0x908] sm:$0xff]
        %v1177 = vld [vmem:[#allocation7 + $0x910] sm:$0xff]
        %v1178 = vld [vmem:[#allocation7 + $0x918] sm:$0xff]
        %v1179 = vld [vmem:[#allocation7 + $0x920] sm:$0xff]
        %v1180 = vld [vmem:[#allocation7 + $0x928] sm:$0xff]
        %v1181 = vld [vmem:[#allocation7 + $0x930] sm:$0xff]
        %v1182 = vld [vmem:[#allocation7 + $0x938] sm:$0xff]
        %v1183 = vld [vmem:[#allocation7 + $0x940] sm:$0xff]
        %v1184 = vld [vmem:[#allocation7 + $0x948] sm:$0xff]
        %v1185 = vld [vmem:[#allocation7 + $0x950] sm:$0xff]
        %v1186 = vld [vmem:[#allocation7 + $0x958] sm:$0xff]
        %v1187 = vld [vmem:[#allocation7 + $0x960] sm:$0xff]
        %v1188 = vld [vmem:[#allocation7 + $0x968] sm:$0xff]
        %v1189 = vld [vmem:[#allocation7 + $0x970] sm:$0xff]
        %v1190 = vld [vmem:[#allocation7 + $0x978] sm:$0xff]
        %v1191 = vld [vmem:[#allocation7 + $0x980] sm:$0xff]
        %v1192 = vld [vmem:[#allocation7 + $0x988] sm:$0xff]
        %v1193 = vld [vmem:[#allocation7 + $0x990] sm:$0xff]
        %v1194 = vld [vmem:[#allocation7 + $0x998] sm:$0xff]
        %v1195 = vld [vmem:[#allocation7 + $0x9a0] sm:$0xff]
        %v1196 = vld [vmem:[#allocation7 + $0x9a8] sm:$0xff]
        %v1197 = vld [vmem:[#allocation7 + $0x9b0] sm:$0xff]
        %v1198 = vld [vmem:[#allocation7 + $0x9b8] sm:$0xff]
        %v1199 = vld [vmem:[#allocation7 + $0x9c0] sm:$0xff]
        %v1200 = vld [vmem:[#allocation7 + $0x9c8] sm:$0xff]
        %v1201 = vld [vmem:[#allocation7 + $0x9d0] sm:$0xff]
        %v1202 = vld [vmem:[#allocation7 + $0x9d8] sm:$0xff]
        %v1203 = vld [vmem:[#allocation7 + $0x9e0] sm:$0xff]
        %v1204 = vld [vmem:[#allocation7 + $0x9e8] sm:$0xff]
        %v1205 = vld [vmem:[#allocation7 + $0x9f0] sm:$0xff]
        %v1206 = vld [vmem:[#allocation7 + $0x9f8] sm:$0xff]
        %v1207 = vld [vmem:[#allocation7 + $0xa00] sm:$0xff]
        %v1208 = vld [vmem:[#allocation7 + $0xa08] sm:$0xff]
        %v1209 = vld [vmem:[#allocation7 + $0xa10] sm:$0xff]
        %v1210 = vld [vmem:[#allocation7 + $0xa18] sm:$0xff]
        %v1211 = vld [vmem:[#allocation7 + $0xa20] sm:$0xff]
        %v1212 = vld [vmem:[#allocation7 + $0xa28] sm:$0xff]
        %v1213 = vld [vmem:[#allocation7 + $0xa30] sm:$0xff]
        %v1214 = vld [vmem:[#allocation7 + $0xa38] sm:$0xff]
        %v1215 = vld [vmem:[#allocation7 + $0xa40] sm:$0xff]
        %v1216 = vld [vmem:[#allocation7 + $0xa48] sm:$0xff]
        %v1217 = vld [vmem:[#allocation7 + $0xa50] sm:$0xff]
        %v1218 = vld [vmem:[#allocation7 + $0xa58] sm:$0xff]
        %v1219 = vld [vmem:[#allocation7 + $0xa60] sm:$0xff]
        %v1220 = vld [vmem:[#allocation7 + $0xa68] sm:$0xff]
        %v1221 = vld [vmem:[#allocation7 + $0xa70] sm:$0xff]
        %v1222 = vld [vmem:[#allocation7 + $0xa78] sm:$0xff]
        %v1223 = vld [vmem:[#allocation7 + $0xa80] sm:$0xff]
        %v1224 = vld [vmem:[#allocation7 + $0xa88] sm:$0xff]
        %v1225 = vld [vmem:[#allocation7 + $0xa90] sm:$0xff]
        %v1226 = vld [vmem:[#allocation7 + $0xa98] sm:$0xff]
        %v1227 = vld [vmem:[#allocation7 + $0xaa0] sm:$0xff]
        %v1228 = vld [vmem:[#allocation7 + $0xaa8] sm:$0xff]
        %v1229 = vld [vmem:[#allocation7 + $0xab0] sm:$0xff]
        %v1230 = vld [vmem:[#allocation7 + $0xab8] sm:$0xff]
        %v1231 = vld [vmem:[#allocation7 + $0xac0] sm:$0xff]
        %v1232 = vld [vmem:[#allocation7 + $0xac8] sm:$0xff]
        %v1233 = vld [vmem:[#allocation7 + $0xad0] sm:$0xff]
        %v1234 = vld [vmem:[#allocation7 + $0xad8] sm:$0xff]
        %v1235 = vld [vmem:[#allocation7 + $0xae0] sm:$0xff]
        %v1236 = vld [vmem:[#allocation7 + $0xae8] sm:$0xff]
        %v1237 = vld [vmem:[#allocation7 + $0xaf0] sm:$0xff]
        %v1238 = vld [vmem:[#allocation7 + $0xaf8] sm:$0xff]
        %v1239 = vld [vmem:[#allocation7 + $0xb00] sm:$0xff]
        %v1240 = vld [vmem:[#allocation7 + $0xb08] sm:$0xff]
        %v1241 = vld [vmem:[#allocation7 + $0xb10] sm:$0xff]
        %v1242 = vld [vmem:[#allocation7 + $0xb18] sm:$0xff]
        %v1243 = vld [vmem:[#allocation7 + $0xb20] sm:$0xff]
        %v1244 = vld [vmem:[#allocation7 + $0xb28] sm:$0xff]
        %v1245 = vld [vmem:[#allocation7 + $0xb30] sm:$0xff]
        %v1246 = vld [vmem:[#allocation7 + $0xb38] sm:$0xff]
        %v1247 = vld [vmem:[#allocation7 + $0xb40] sm:$0xff]
        %v1248 = vld [vmem:[#allocation7 + $0xb48] sm:$0xff]
        %v1249 = vld [vmem:[#allocation7 + $0xb50] sm:$0xff]
        %v1250 = vld [vmem:[#allocation7 + $0xb58] sm:$0xff]
        %v1251 = vld [vmem:[#allocation7 + $0xb60] sm:$0xff]
        %v1252 = vld [vmem:[#allocation7 + $0xb68] sm:$0xff]
        %v1253 = vld [vmem:[#allocation7 + $0xb70] sm:$0xff]
        %v1254 = vld [vmem:[#allocation7 + $0xb78] sm:$0xff]
        %v1255 = vld [vmem:[#allocation7 + $0xb80] sm:$0xff]
        %v1256 = vld [vmem:[#allocation7 + $0xb88] sm:$0xff]
        %v1257 = vld [vmem:[#allocation7 + $0xb90] sm:$0xff]
        %v1258 = vld [vmem:[#allocation7 + $0xb98] sm:$0xff]
        %v1259 = vld [vmem:[#allocation7 + $0xba0] sm:$0xff]
        %v1260 = vld [vmem:[#allocation7 + $0xba8] sm:$0xff]
        %v1261 = vld [vmem:[#allocation7 + $0xbb0] sm:$0xff]
        %v1262 = vld [vmem:[#allocation7 + $0xbb8] sm:$0xff]
        %v1263 = vld [vmem:[#allocation7 + $0xbc0] sm:$0xff]
        %v1264 = vld [vmem:[#allocation7 + $0xbc8] sm:$0xff]
        %v1265 = vld [vmem:[#allocation7 + $0xbd0] sm:$0xff]
        %v1266 = vld [vmem:[#allocation7 + $0xbd8] sm:$0xff]
        %v1267 = vld [vmem:[#allocation7 + $0xbe0] sm:$0xff]
        %v1268 = vld [vmem:[#allocation7 + $0xbe8] sm:$0xff]
        %v1269 = vld [vmem:[#allocation7 + $0xbf0] sm:$0xff]
        %v1270 = vld [vmem:[#allocation7 + $0xbf8] sm:$0xff]
        %v1271 = vld [vmem:[#allocation8] sm:$0x3]
        %v1273 = vperm.slane %v1271, 0
        %v1274 = vperm.slane %v1271, 1
        %1277 = vmatpush.msra.mxu0 %v917
        %1278 = vmatpush.msra.mxu0 %v915
        %1279 = vmatpush.msra.mxu0 %v913
        %1280 = vmatpush.msra.mxu0 %v911
        %1281 = vmatpush.msra.mxu0 %v909
        %1282 = vmatpush.msra.mxu0 %v907
        %1283 = vmatpush.msra.mxu0 %v905
        %1284 = vmatpush.msra.mxu0 %v903
        %1285 = vmatpush.msra.mxu0 %v901
        %1286 = vmatpush.msra.mxu0 %v899
        %1287 = vmatpush.msra.mxu0 %v897
        %1288 = vmatpush.msra.mxu0 %v895
        %1289 = vmatpush.msra.mxu0 %v893
        %1290 = vmatpush.msra.mxu0 %v891
        %1291 = vmatpush.msra.mxu0 %v889
        %1292 = vmatpush.msra.mxu0 %v887
        %1293 = vmatmul.f32.gmra.mxu0 %v863
        %v1294 = vpop.f32.mrf.mxu0
        %v1295 = vadd.f32 %v1273, %v1294
        %1296 = vmatmul.f32.gmra.mxu0 %v875
        %v1297 = vpop.f32.mrf.mxu0
        %v1298 = vadd.f32 %v1273, %v1297
        %1299 = vdwg.mxu0
        %1300 = vmatpush.msra.mxu0 %v949
        %1301 = vmatpush.msra.mxu0 %v947
        %1302 = vmatpush.msra.mxu0 %v945
        %1303 = vmatpush.msra.mxu0 %v943
        %1304 = vmatpush.msra.mxu0 %v941
        %1305 = vmatpush.msra.mxu0 %v939
        %1306 = vmatpush.msra.mxu0 %v937
        %1307 = vmatpush.msra.mxu0 %v935
        %1308 = vmatpush.msra.mxu0 %v933
        %1309 = vmatpush.msra.mxu0 %v931
        %1310 = vmatpush.msra.mxu0 %v929
        %1311 = vmatpush.msra.mxu0 %v927
        %1312 = vmatpush.msra.mxu0 %v925
        %1313 = vmatpush.msra.mxu0 %v923
        %1314 = vmatpush.msra.mxu0 %v921
        %1315 = vmatpush.msra.mxu0 %v919
        %1316 = vmatmul.f32.gmra.mxu0 %v864
        %v1317 = vpop.f32.mrf.mxu0
        %v1318 = vadd.f32 %v1295, %v1317
        %1319 = vmatmul.f32.gmra.mxu0 %v876
        %v1320 = vpop.f32.mrf.mxu0
        %v1321 = vadd.f32 %v1298, %v1320
        %1322 = vdwg.mxu0
        %1323 = vmatpush.msra.mxu0 %v981
        %1324 = vmatpush.msra.mxu0 %v979
        %1325 = vmatpush.msra.mxu0 %v977
        %1326 = vmatpush.msra.mxu0 %v975
        %1327 = vmatpush.msra.mxu0 %v973
        %1328 = vmatpush.msra.mxu0 %v971
        %1329 = vmatpush.msra.mxu0 %v969
        %1330 = vmatpush.msra.mxu0 %v967
        %1331 = vmatpush.msra.mxu0 %v965
        %1332 = vmatpush.msra.mxu0 %v963
        %1333 = vmatpush.msra.mxu0 %v961
        %1334 = vmatpush.msra.mxu0 %v959
        %1335 = vmatpush.msra.mxu0 %v957
        %1336 = vmatpush.msra.mxu0 %v955
        %1337 = vmatpush.msra.mxu0 %v953
        %1338 = vmatpush.msra.mxu0 %v951
        %1339 = vmatmul.f32.gmra.mxu0 %v865
        %v1340 = vpop.f32.mrf.mxu0
        %v1341 = vadd.f32 %v1318, %v1340
        %1342 = vmatmul.f32.gmra.mxu0 %v877
        %v1343 = vpop.f32.mrf.mxu0
        %v1344 = vadd.f32 %v1321, %v1343
        %1345 = vdwg.mxu0
        %1346 = vmatpush.msra.mxu0 %v1013
        %1347 = vmatpush.msra.mxu0 %v1011
        %1348 = vmatpush.msra.mxu0 %v1009
        %1349 = vmatpush.msra.mxu0 %v1007
        %1350 = vmatpush.msra.mxu0 %v1005
        %1351 = vmatpush.msra.mxu0 %v1003
        %1352 = vmatpush.msra.mxu0 %v1001
        %1353 = vmatpush.msra.mxu0 %v999
        %1354 = vmatpush.msra.mxu0 %v997
        %1355 = vmatpush.msra.mxu0 %v995
        %1356 = vmatpush.msra.mxu0 %v993
        %1357 = vmatpush.msra.mxu0 %v991
        %1358 = vmatpush.msra.mxu0 %v989
        %1359 = vmatpush.msra.mxu0 %v987
        %1360 = vmatpush.msra.mxu0 %v985
        %1361 = vmatpush.msra.mxu0 %v983
        %1362 = vmatmul.f32.gmra.mxu0 %v866
        %v1363 = vpop.f32.mrf.mxu0
        %v1364 = vadd.f32 %v1341, %v1363
        %1365 = vmatmul.f32.gmra.mxu0 %v878
        %v1366 = vpop.f32.mrf.mxu0
        %v1367 = vadd.f32 %v1344, %v1366
        %1368 = vdwg.mxu0
        %1369 = vmatpush.msra.mxu0 %v1045
        %1370 = vmatpush.msra.mxu0 %v1043
        %1371 = vmatpush.msra.mxu0 %v1041
        %1372 = vmatpush.msra.mxu0 %v1039
        %1373 = vmatpush.msra.mxu0 %v1037
        %1374 = vmatpush.msra.mxu0 %v1035
        %1375 = vmatpush.msra.mxu0 %v1033
        %1376 = vmatpush.msra.mxu0 %v1031
        %1377 = vmatpush.msra.mxu0 %v1029
        %1378 = vmatpush.msra.mxu0 %v1027
        %1379 = vmatpush.msra.mxu0 %v1025
        %1380 = vmatpush.msra.mxu0 %v1023
        %1381 = vmatpush.msra.mxu0 %v1021
        %1382 = vmatpush.msra.mxu0 %v1019
        %1383 = vmatpush.msra.mxu0 %v1017
        %1384 = vmatpush.msra.mxu0 %v1015
        %1385 = vmatmul.f32.gmra.mxu0 %v867
        %v1386 = vpop.f32.mrf.mxu0
        %v1387 = vadd.f32 %v1364, %v1386
        %1388 = vmatmul.f32.gmra.mxu0 %v879
        %v1389 = vpop.f32.mrf.mxu0
        %v1390 = vadd.f32 %v1367, %v1389
        %1391 = vdwg.mxu0
        %1392 = vmatpush.msra.mxu0 %v1077
        %1393 = vmatpush.msra.mxu0 %v1075
        %1394 = vmatpush.msra.mxu0 %v1073
        %1395 = vmatpush.msra.mxu0 %v1071
        %1396 = vmatpush.msra.mxu0 %v1069
        %1397 = vmatpush.msra.mxu0 %v1067
        %1398 = vmatpush.msra.mxu0 %v1065
        %1399 = vmatpush.msra.mxu0 %v1063
        %1400 = vmatpush.msra.mxu0 %v1061
        %1401 = vmatpush.msra.mxu0 %v1059
        %1402 = vmatpush.msra.mxu0 %v1057
        %1403 = vmatpush.msra.mxu0 %v1055
        %1404 = vmatpush.msra.mxu0 %v1053
        %1405 = vmatpush.msra.mxu0 %v1051
        %1406 = vmatpush.msra.mxu0 %v1049
        %1407 = vmatpush.msra.mxu0 %v1047
        %1408 = vmatmul.f32.gmra.mxu0 %v868
        %v1409 = vpop.f32.mrf.mxu0
        %v1410 = vadd.f32 %v1387, %v1409
        %1411 = vmatmul.f32.gmra.mxu0 %v880
        %v1412 = vpop.f32.mrf.mxu0
        %v1413 = vadd.f32 %v1390, %v1412
        %1414 = vdwg.mxu0
        %1415 = vmatpush.msra.mxu0 %v1109
        %1416 = vmatpush.msra.mxu0 %v1107
        %1417 = vmatpush.msra.mxu0 %v1105
        %1418 = vmatpush.msra.mxu0 %v1103
        %1419 = vmatpush.msra.mxu0 %v1101
        %1420 = vmatpush.msra.mxu0 %v1099
        %1421 = vmatpush.msra.mxu0 %v1097
        %1422 = vmatpush.msra.mxu0 %v1095
        %1423 = vmatpush.msra.mxu0 %v1093
        %1424 = vmatpush.msra.mxu0 %v1091
        %1425 = vmatpush.msra.mxu0 %v1089
        %1426 = vmatpush.msra.mxu0 %v1087
        %1427 = vmatpush.msra.mxu0 %v1085
        %1428 = vmatpush.msra.mxu0 %v1083
        %1429 = vmatpush.msra.mxu0 %v1081
        %1430 = vmatpush.msra.mxu0 %v1079
        %1431 = vmatmul.f32.gmra.mxu0 %v869
        %v1432 = vpop.f32.mrf.mxu0
        %v1433 = vadd.f32 %v1410, %v1432
        %1434 = vmatmul.f32.gmra.mxu0 %v881
        %v1435 = vpop.f32.mrf.mxu0
        %v1436 = vadd.f32 %v1413, %v1435
        %1437 = vdwg.mxu0
        %1438 = vmatpush.msra.mxu0 %v1141
        %1439 = vmatpush.msra.mxu0 %v1139
        %1440 = vmatpush.msra.mxu0 %v1137
        %1441 = vmatpush.msra.mxu0 %v1135
        %1442 = vmatpush.msra.mxu0 %v1133
        %1443 = vmatpush.msra.mxu0 %v1131
        %1444 = vmatpush.msra.mxu0 %v1129
        %1445 = vmatpush.msra.mxu0 %v1127
        %1446 = vmatpush.msra.mxu0 %v1125
        %1447 = vmatpush.msra.mxu0 %v1123
        %1448 = vmatpush.msra.mxu0 %v1121
        %1449 = vmatpush.msra.mxu0 %v1119
        %1450 = vmatpush.msra.mxu0 %v1117
        %1451 = vmatpush.msra.mxu0 %v1115
        %1452 = vmatpush.msra.mxu0 %v1113
        %1453 = vmatpush.msra.mxu0 %v1111
        %1454 = vmatmul.f32.gmra.mxu0 %v870
        %v1455 = vpop.f32.mrf.mxu0
        %v1456 = vadd.f32 %v1433, %v1455
        %1457 = vmatmul.f32.gmra.mxu0 %v882
        %v1458 = vpop.f32.mrf.mxu0
        %v1459 = vadd.f32 %v1436, %v1458
        %1460 = vdwg.mxu0
        %1461 = vmatpush.msra.mxu0 %v1173
        %1462 = vmatpush.msra.mxu0 %v1171
        %1463 = vmatpush.msra.mxu0 %v1169
        %1464 = vmatpush.msra.mxu0 %v1167
        %1465 = vmatpush.msra.mxu0 %v1165
        %1466 = vmatpush.msra.mxu0 %v1163
        %1467 = vmatpush.msra.mxu0 %v1161
        %1468 = vmatpush.msra.mxu0 %v1159
        %1469 = vmatpush.msra.mxu0 %v1157
        %1470 = vmatpush.msra.mxu0 %v1155
        %1471 = vmatpush.msra.mxu0 %v1153
        %1472 = vmatpush.msra.mxu0 %v1151
        %1473 = vmatpush.msra.mxu0 %v1149
        %1474 = vmatpush.msra.mxu0 %v1147
        %1475 = vmatpush.msra.mxu0 %v1145
        %1476 = vmatpush.msra.mxu0 %v1143
        %1477 = vmatmul.f32.gmra.mxu0 %v871
        %v1478 = vpop.f32.mrf.mxu0
        %v1479 = vadd.f32 %v1456, %v1478
        %1480 = vmatmul.f32.gmra.mxu0 %v883
        %v1481 = vpop.f32.mrf.mxu0
        %v1482 = vadd.f32 %v1459, %v1481
        %1483 = vdwg.mxu0
        %1484 = vmatpush.msra.mxu0 %v1205
        %1485 = vmatpush.msra.mxu0 %v1203
        %1486 = vmatpush.msra.mxu0 %v1201
        %1487 = vmatpush.msra.mxu0 %v1199
        %1488 = vmatpush.msra.mxu0 %v1197
        %1489 = vmatpush.msra.mxu0 %v1195
        %1490 = vmatpush.msra.mxu0 %v1193
        %1491 = vmatpush.msra.mxu0 %v1191
        %1492 = vmatpush.msra.mxu0 %v1189
        %1493 = vmatpush.msra.mxu0 %v1187
        %1494 = vmatpush.msra.mxu0 %v1185
        %1495 = vmatpush.msra.mxu0 %v1183
        %1496 = vmatpush.msra.mxu0 %v1181
        %1497 = vmatpush.msra.mxu0 %v1179
        %1498 = vmatpush.msra.mxu0 %v1177
        %1499 = vmatpush.msra.mxu0 %v1175
        %1500 = vmatmul.f32.gmra.mxu0 %v872
        %v1501 = vpop.f32.mrf.mxu0
        %v1502 = vadd.f32 %v1479, %v1501
        %1503 = vmatmul.f32.gmra.mxu0 %v884
        %v1504 = vpop.f32.mrf.mxu0
        %v1505 = vadd.f32 %v1482, %v1504
        %1506 = vdwg.mxu0
        %1507 = vmatpush.msra.mxu0 %v1237
        %1508 = vmatpush.msra.mxu0 %v1235
        %1509 = vmatpush.msra.mxu0 %v1233
        %1510 = vmatpush.msra.mxu0 %v1231
        %1511 = vmatpush.msra.mxu0 %v1229
        %1512 = vmatpush.msra.mxu0 %v1227
        %1513 = vmatpush.msra.mxu0 %v1225
        %1514 = vmatpush.msra.mxu0 %v1223
        %1515 = vmatpush.msra.mxu0 %v1221
        %1516 = vmatpush.msra.mxu0 %v1219
        %1517 = vmatpush.msra.mxu0 %v1217
        %1518 = vmatpush.msra.mxu0 %v1215
        %1519 = vmatpush.msra.mxu0 %v1213
        %1520 = vmatpush.msra.mxu0 %v1211
        %1521 = vmatpush.msra.mxu0 %v1209
        %1522 = vmatpush.msra.mxu0 %v1207
        %1523 = vmatmul.f32.gmra.mxu0 %v873
        %v1524 = vpop.f32.mrf.mxu0
        %v1525 = vadd.f32 %v1502, %v1524
        %1526 = vmatmul.f32.gmra.mxu0 %v885
        %v1527 = vpop.f32.mrf.mxu0
        %v1528 = vadd.f32 %v1505, %v1527
        %1529 = vdwg.mxu0
        %1530 = vmatpush.msra.mxu0 %v1269
        %1531 = vmatpush.msra.mxu0 %v1267
        %1532 = vmatpush.msra.mxu0 %v1265
        %1533 = vmatpush.msra.mxu0 %v1263
        %1534 = vmatpush.msra.mxu0 %v1261
        %1535 = vmatpush.msra.mxu0 %v1259
        %1536 = vmatpush.msra.mxu0 %v1257
        %1537 = vmatpush.msra.mxu0 %v1255
        %1538 = vmatpush.msra.mxu0 %v1253
        %1539 = vmatpush.msra.mxu0 %v1251
        %1540 = vmatpush.msra.mxu0 %v1249
        %1541 = vmatpush.msra.mxu0 %v1247
        %1542 = vmatpush.msra.mxu0 %v1245
        %1543 = vmatpush.msra.mxu0 %v1243
        %1544 = vmatpush.msra.mxu0 %v1241
        %1545 = vmatpush.msra.mxu0 %v1239
        %1546 = vmatmul.f32.gmra.mxu0 %v874
        %v1547 = vpop.f32.mrf.mxu0
        %v1548 = vadd.f32 %v1525, %v1547
        %1549 = vmatmul.f32.gmra.mxu0 %v886
        %v1550 = vpop.f32.mrf.mxu0
        %v1551 = vadd.f32 %v1528, %v1550
        %1552 = vdwg.mxu0
        %1553 = vmatpush.msra.mxu0 %v918
        %1554 = vmatpush.msra.mxu0 %v916
        %1555 = vmatpush.msra.mxu0 %v914
        %1556 = vmatpush.msra.mxu0 %v912
        %1557 = vmatpush.msra.mxu0 %v910
        %1558 = vmatpush.msra.mxu0 %v908
        %1559 = vmatpush.msra.mxu0 %v906
        %1560 = vmatpush.msra.mxu0 %v904
        %1561 = vmatpush.msra.mxu0 %v902
        %1562 = vmatpush.msra.mxu0 %v900
        %1563 = vmatpush.msra.mxu0 %v898
        %1564 = vmatpush.msra.mxu0 %v896
        %1565 = vmatpush.msra.mxu0 %v894
        %1566 = vmatpush.msra.mxu0 %v892
        %1567 = vmatpush.msra.mxu0 %v890
        %1568 = vmatpush.msra.mxu0 %v888
        %1569 = vmatmul.f32.gmra.mxu0 %v863
        %v1570 = vpop.f32.mrf.mxu0
        %v1571 = vadd.f32 %v1274, %v1570
        %1572 = vmatmul.f32.gmra.mxu0 %v875
        %v1573 = vpop.f32.mrf.mxu0
        %v1574 = vadd.f32 %v1274, %v1573
        %1575 = vdwg.mxu0
        %1576 = vmatpush.msra.mxu0 %v950
        %1577 = vmatpush.msra.mxu0 %v948
        %1578 = vmatpush.msra.mxu0 %v946
        %1579 = vmatpush.msra.mxu0 %v944
        %1580 = vmatpush.msra.mxu0 %v942
        %1581 = vmatpush.msra.mxu0 %v940
        %1582 = vmatpush.msra.mxu0 %v938
        %1583 = vmatpush.msra.mxu0 %v936
        %1584 = vmatpush.msra.mxu0 %v934
        %1585 = vmatpush.msra.mxu0 %v932
        %1586 = vmatpush.msra.mxu0 %v930
        %1587 = vmatpush.msra.mxu0 %v928
        %1588 = vmatpush.msra.mxu0 %v926
        %1589 = vmatpush.msra.mxu0 %v924
        %1590 = vmatpush.msra.mxu0 %v922
        %1591 = vmatpush.msra.mxu0 %v920
        %1592 = vmatmul.f32.gmra.mxu0 %v864
        %v1593 = vpop.f32.mrf.mxu0
        %v1594 = vadd.f32 %v1571, %v1593
        %1595 = vmatmul.f32.gmra.mxu0 %v876
        %v1596 = vpop.f32.mrf.mxu0
        %v1597 = vadd.f32 %v1574, %v1596
        %1598 = vdwg.mxu0
        %1599 = vmatpush.msra.mxu0 %v982
        %1600 = vmatpush.msra.mxu0 %v980
        %1601 = vmatpush.msra.mxu0 %v978
        %1602 = vmatpush.msra.mxu0 %v976
        %1603 = vmatpush.msra.mxu0 %v974
        %1604 = vmatpush.msra.mxu0 %v972
        %1605 = vmatpush.msra.mxu0 %v970
        %1606 = vmatpush.msra.mxu0 %v968
        %1607 = vmatpush.msra.mxu0 %v966
        %1608 = vmatpush.msra.mxu0 %v964
        %1609 = vmatpush.msra.mxu0 %v962
        %1610 = vmatpush.msra.mxu0 %v960
        %1611 = vmatpush.msra.mxu0 %v958
        %1612 = vmatpush.msra.mxu0 %v956
        %1613 = vmatpush.msra.mxu0 %v954
        %1614 = vmatpush.msra.mxu0 %v952
        %1615 = vmatmul.f32.gmra.mxu0 %v865
        %v1616 = vpop.f32.mrf.mxu0
        %v1617 = vadd.f32 %v1594, %v1616
        %1618 = vmatmul.f32.gmra.mxu0 %v877
        %v1619 = vpop.f32.mrf.mxu0
        %v1620 = vadd.f32 %v1597, %v1619
        %1621 = vdwg.mxu0
        %1622 = vmatpush.msra.mxu0 %v1014
        %1623 = vmatpush.msra.mxu0 %v1012
        %1624 = vmatpush.msra.mxu0 %v1010
        %1625 = vmatpush.msra.mxu0 %v1008
        %1626 = vmatpush.msra.mxu0 %v1006
        %1627 = vmatpush.msra.mxu0 %v1004
        %1628 = vmatpush.msra.mxu0 %v1002
        %1629 = vmatpush.msra.mxu0 %v1000
        %1630 = vmatpush.msra.mxu0 %v998
        %1631 = vmatpush.msra.mxu0 %v996
        %1632 = vmatpush.msra.mxu0 %v994
        %1633 = vmatpush.msra.mxu0 %v992
        %1634 = vmatpush.msra.mxu0 %v990
        %1635 = vmatpush.msra.mxu0 %v988
        %1636 = vmatpush.msra.mxu0 %v986
        %1637 = vmatpush.msra.mxu0 %v984
        %1638 = vmatmul.f32.gmra.mxu0 %v866
        %v1639 = vpop.f32.mrf.mxu0
        %v1640 = vadd.f32 %v1617, %v1639
        %1641 = vmatmul.f32.gmra.mxu0 %v878
        %v1642 = vpop.f32.mrf.mxu0
        %v1643 = vadd.f32 %v1620, %v1642
        %1644 = vdwg.mxu0
        %1645 = vmatpush.msra.mxu0 %v1046
        %1646 = vmatpush.msra.mxu0 %v1044
        %1647 = vmatpush.msra.mxu0 %v1042
        %1648 = vmatpush.msra.mxu0 %v1040
        %1649 = vmatpush.msra.mxu0 %v1038
        %1650 = vmatpush.msra.mxu0 %v1036
        %1651 = vmatpush.msra.mxu0 %v1034
        %1652 = vmatpush.msra.mxu0 %v1032
        %1653 = vmatpush.msra.mxu0 %v1030
        %1654 = vmatpush.msra.mxu0 %v1028
        %1655 = vmatpush.msra.mxu0 %v1026
        %1656 = vmatpush.msra.mxu0 %v1024
        %1657 = vmatpush.msra.mxu0 %v1022
        %1658 = vmatpush.msra.mxu0 %v1020
        %1659 = vmatpush.msra.mxu0 %v1018
        %1660 = vmatpush.msra.mxu0 %v1016
        %1661 = vmatmul.f32.gmra.mxu0 %v867
        %v1662 = vpop.f32.mrf.mxu0
        %v1663 = vadd.f32 %v1640, %v1662
        %1664 = vmatmul.f32.gmra.mxu0 %v879
        %v1665 = vpop.f32.mrf.mxu0
        %v1666 = vadd.f32 %v1643, %v1665
        %1667 = vdwg.mxu0
        %1668 = vmatpush.msra.mxu0 %v1078
        %1669 = vmatpush.msra.mxu0 %v1076
        %1670 = vmatpush.msra.mxu0 %v1074
        %1671 = vmatpush.msra.mxu0 %v1072
        %1672 = vmatpush.msra.mxu0 %v1070
        %1673 = vmatpush.msra.mxu0 %v1068
        %1674 = vmatpush.msra.mxu0 %v1066
        %1675 = vmatpush.msra.mxu0 %v1064
        %1676 = vmatpush.msra.mxu0 %v1062
        %1677 = vmatpush.msra.mxu0 %v1060
        %1678 = vmatpush.msra.mxu0 %v1058
        %1679 = vmatpush.msra.mxu0 %v1056
        %1680 = vmatpush.msra.mxu0 %v1054
        %1681 = vmatpush.msra.mxu0 %v1052
        %1682 = vmatpush.msra.mxu0 %v1050
        %1683 = vmatpush.msra.mxu0 %v1048
        %1684 = vmatmul.f32.gmra.mxu0 %v868
        %v1685 = vpop.f32.mrf.mxu0
        %v1686 = vadd.f32 %v1663, %v1685
        %1687 = vmatmul.f32.gmra.mxu0 %v880
        %v1688 = vpop.f32.mrf.mxu0
        %v1689 = vadd.f32 %v1666, %v1688
        %1690 = vdwg.mxu0
        %1691 = vmatpush.msra.mxu0 %v1110
        %1692 = vmatpush.msra.mxu0 %v1108
        %1693 = vmatpush.msra.mxu0 %v1106
        %1694 = vmatpush.msra.mxu0 %v1104
        %1695 = vmatpush.msra.mxu0 %v1102
        %1696 = vmatpush.msra.mxu0 %v1100
        %1697 = vmatpush.msra.mxu0 %v1098
        %1698 = vmatpush.msra.mxu0 %v1096
        %1699 = vmatpush.msra.mxu0 %v1094
        %1700 = vmatpush.msra.mxu0 %v1092
        %1701 = vmatpush.msra.mxu0 %v1090
        %1702 = vmatpush.msra.mxu0 %v1088
        %1703 = vmatpush.msra.mxu0 %v1086
        %1704 = vmatpush.msra.mxu0 %v1084
        %1705 = vmatpush.msra.mxu0 %v1082
        %1706 = vmatpush.msra.mxu0 %v1080
        %1707 = vmatmul.f32.gmra.mxu0 %v869
        %v1708 = vpop.f32.mrf.mxu0
        %v1709 = vadd.f32 %v1686, %v1708
        %1710 = vmatmul.f32.gmra.mxu0 %v881
        %v1711 = vpop.f32.mrf.mxu0
        %v1712 = vadd.f32 %v1689, %v1711
        %1713 = vdwg.mxu0
        %1714 = vmatpush.msra.mxu0 %v1142
        %1715 = vmatpush.msra.mxu0 %v1140
        %1716 = vmatpush.msra.mxu0 %v1138
        %1717 = vmatpush.msra.mxu0 %v1136
        %1718 = vmatpush.msra.mxu0 %v1134
        %1719 = vmatpush.msra.mxu0 %v1132
        %1720 = vmatpush.msra.mxu0 %v1130
        %1721 = vmatpush.msra.mxu0 %v1128
        %1722 = vmatpush.msra.mxu0 %v1126
        %1723 = vmatpush.msra.mxu0 %v1124
        %1724 = vmatpush.msra.mxu0 %v1122
        %1725 = vmatpush.msra.mxu0 %v1120
        %1726 = vmatpush.msra.mxu0 %v1118
        %1727 = vmatpush.msra.mxu0 %v1116
        %1728 = vmatpush.msra.mxu0 %v1114
        %1729 = vmatpush.msra.mxu0 %v1112
        %1730 = vmatmul.f32.gmra.mxu0 %v870
        %v1731 = vpop.f32.mrf.mxu0
        %v1732 = vadd.f32 %v1709, %v1731
        %1733 = vmatmul.f32.gmra.mxu0 %v882
        %v1734 = vpop.f32.mrf.mxu0
        %v1735 = vadd.f32 %v1712, %v1734
        %1736 = vdwg.mxu0
        %1737 = vmatpush.msra.mxu0 %v1174
        %1738 = vmatpush.msra.mxu0 %v1172
        %1739 = vmatpush.msra.mxu0 %v1170
        %1740 = vmatpush.msra.mxu0 %v1168
        %1741 = vmatpush.msra.mxu0 %v1166
        %1742 = vmatpush.msra.mxu0 %v1164
        %1743 = vmatpush.msra.mxu0 %v1162
        %1744 = vmatpush.msra.mxu0 %v1160
        %1745 = vmatpush.msra.mxu0 %v1158
        %1746 = vmatpush.msra.mxu0 %v1156
        %1747 = vmatpush.msra.mxu0 %v1154
        %1748 = vmatpush.msra.mxu0 %v1152
        %1749 = vmatpush.msra.mxu0 %v1150
        %1750 = vmatpush.msra.mxu0 %v1148
        %1751 = vmatpush.msra.mxu0 %v1146
        %1752 = vmatpush.msra.mxu0 %v1144
        %1753 = vmatmul.f32.gmra.mxu0 %v871
        %v1754 = vpop.f32.mrf.mxu0
        %v1755 = vadd.f32 %v1732, %v1754
        %1756 = vmatmul.f32.gmra.mxu0 %v883
        %v1757 = vpop.f32.mrf.mxu0
        %v1758 = vadd.f32 %v1735, %v1757
        %1759 = vdwg.mxu0
        %1760 = vmatpush.msra.mxu0 %v1206
        %1761 = vmatpush.msra.mxu0 %v1204
        %1762 = vmatpush.msra.mxu0 %v1202
        %1763 = vmatpush.msra.mxu0 %v1200
        %1764 = vmatpush.msra.mxu0 %v1198
        %1765 = vmatpush.msra.mxu0 %v1196
        %1766 = vmatpush.msra.mxu0 %v1194
        %1767 = vmatpush.msra.mxu0 %v1192
        %1768 = vmatpush.msra.mxu0 %v1190
        %1769 = vmatpush.msra.mxu0 %v1188
        %1770 = vmatpush.msra.mxu0 %v1186
        %1771 = vmatpush.msra.mxu0 %v1184
        %1772 = vmatpush.msra.mxu0 %v1182
        %1773 = vmatpush.msra.mxu0 %v1180
        %1774 = vmatpush.msra.mxu0 %v1178
        %1775 = vmatpush.msra.mxu0 %v1176
        %1776 = vmatmul.f32.gmra.mxu0 %v872
        %v1777 = vpop.f32.mrf.mxu0
        %v1778 = vadd.f32 %v1755, %v1777
        %1779 = vmatmul.f32.gmra.mxu0 %v884
        %v1780 = vpop.f32.mrf.mxu0
        %v1781 = vadd.f32 %v1758, %v1780
        %1782 = vdwg.mxu0
        %1783 = vmatpush.msra.mxu0 %v1238
        %1784 = vmatpush.msra.mxu0 %v1236
        %1785 = vmatpush.msra.mxu0 %v1234
        %1786 = vmatpush.msra.mxu0 %v1232
        %1787 = vmatpush.msra.mxu0 %v1230
        %1788 = vmatpush.msra.mxu0 %v1228
        %1789 = vmatpush.msra.mxu0 %v1226
        %1790 = vmatpush.msra.mxu0 %v1224
        %1791 = vmatpush.msra.mxu0 %v1222
        %1792 = vmatpush.msra.mxu0 %v1220
        %1793 = vmatpush.msra.mxu0 %v1218
        %1794 = vmatpush.msra.mxu0 %v1216
        %1795 = vmatpush.msra.mxu0 %v1214
        %1796 = vmatpush.msra.mxu0 %v1212
        %1797 = vmatpush.msra.mxu0 %v1210
        %1798 = vmatpush.msra.mxu0 %v1208
        %1799 = vmatmul.f32.gmra.mxu0 %v873
        %v1800 = vpop.f32.mrf.mxu0
        %v1801 = vadd.f32 %v1778, %v1800
        %1802 = vmatmul.f32.gmra.mxu0 %v885
        %v1803 = vpop.f32.mrf.mxu0
        %v1804 = vadd.f32 %v1781, %v1803
        %1805 = vdwg.mxu0
        %1806 = vmatpush.msra.mxu0 %v1270
        %1807 = vmatpush.msra.mxu0 %v1268
        %1808 = vmatpush.msra.mxu0 %v1266
        %1809 = vmatpush.msra.mxu0 %v1264
        %1810 = vmatpush.msra.mxu0 %v1262
        %1811 = vmatpush.msra.mxu0 %v1260
        %1812 = vmatpush.msra.mxu0 %v1258
        %1813 = vmatpush.msra.mxu0 %v1256
        %1814 = vmatpush.msra.mxu0 %v1254
        %1815 = vmatpush.msra.mxu0 %v1252
        %1816 = vmatpush.msra.mxu0 %v1250
        %1817 = vmatpush.msra.mxu0 %v1248
        %1818 = vmatpush.msra.mxu0 %v1246
        %1819 = vmatpush.msra.mxu0 %v1244
        %1820 = vmatpush.msra.mxu0 %v1242
        %1821 = vmatpush.msra.mxu0 %v1240
        %1822 = vmatmul.f32.gmra.mxu0 %v874
        %v1823 = vpop.f32.mrf.mxu0
        %v1824 = vadd.f32 %v1801, %v1823
        %1825 = vmatmul.f32.gmra.mxu0 %v886
        %v1826 = vpop.f32.mrf.mxu0
        %v1827 = vadd.f32 %v1804, %v1826
        %1828 = vdwg.mxu0
        %v1829 = vxor.u32 %v1548, 2147483648
        %v1830 = vxor.u32 %v1824, 2147483648
        %v1831 = vxor.u32 %v1551, 2147483648
        %v1832 = vxor.u32 %v1827, 2147483648
        %v1833 = vmul.f32 %v1829, 1.442695
        %v1834 = vpow.pop %v1833
        %v1835 = vmul.f32 %v1830, 1.442695
        %v1836 = vpow.pop %v1835
        %v1837 = vmul.f32 %v1831, 1.442695
        %v1838 = vpow.pop %v1837
        %v1839 = vmul.f32 %v1832, 1.442695
        %v1840 = vpow.pop %v1839
        %v1841 = vadd.f32 %v1834, 1.0
        %v1842 = vadd.f32 %v1836, 1.0
        %v1843 = vadd.f32 %v1838, 1.0
        %v1844 = vadd.f32 %v1840, 1.0
        %v1845 = vrcp.pop %v1841
        %v1846 = vmul.f32 %v1841, %v1845
        %v1847 = vsub.f32 1.0, %v1846
        %v1848 = vmul.f32 %v1845, %v1847
        %v1849 = vadd.f32 %v1845, %v1848
        %vm1850 = vweird.f32 %v1841
        %vm1851 = vweird.f32 %v1845
        %vm1852 = vmor %vm1850, %vm1851
        %v1853 = vsel %vm1852, %v1845, %v1849
        %v1854 = vand.u32 2147483647, %v1841
        %vm1855 = vcmp.eq.f32.partialorder %v1854, 8.507059e+37
        %v1856 = vand.u32 %v1841, 2147483648
        %v1857 = vor.u32 1.1754944e-38, %v1856
        %v1858 = vsel %vm1855, %v1857, %v1853
        %v1859 = vmul.f32 1.0, %v1858
        %v1860 = vrcp.pop %v1842
        %v1861 = vmul.f32 %v1842, %v1860
        %v1862 = vsub.f32 1.0, %v1861
        %v1863 = vmul.f32 %v1860, %v1862
        %v1864 = vadd.f32 %v1860, %v1863
        %vm1865 = vweird.f32 %v1842
        %vm1866 = vweird.f32 %v1860
        %vm1867 = vmor %vm1865, %vm1866
        %v1868 = vsel %vm1867, %v1860, %v1864
        %v1869 = vand.u32 2147483647, %v1842
        %vm1870 = vcmp.eq.f32.partialorder %v1869, 8.507059e+37
        %v1871 = vand.u32 %v1842, 2147483648
        %v1872 = vor.u32 1.1754944e-38, %v1871
        %v1873 = vsel %vm1870, %v1872, %v1868
        %v1874 = vmul.f32 1.0, %v1873
        %v1875 = vrcp.pop %v1843
        %v1876 = vmul.f32 %v1843, %v1875
        %v1877 = vsub.f32 1.0, %v1876
        %v1878 = vmul.f32 %v1875, %v1877
        %v1879 = vadd.f32 %v1875, %v1878
        %vm1880 = vweird.f32 %v1843
        %vm1881 = vweird.f32 %v1875
        %vm1882 = vmor %vm1880, %vm1881
        %v1883 = vsel %vm1882, %v1875, %v1879
        %v1884 = vand.u32 2147483647, %v1843
        %vm1885 = vcmp.eq.f32.partialorder %v1884, 8.507059e+37
        %v1886 = vand.u32 %v1843, 2147483648
        %v1887 = vor.u32 1.1754944e-38, %v1886
        %v1888 = vsel %vm1885, %v1887, %v1883
        %v1889 = vmul.f32 1.0, %v1888
        %v1890 = vrcp.pop %v1844
        %v1891 = vmul.f32 %v1844, %v1890
        %v1892 = vsub.f32 1.0, %v1891
        %v1893 = vmul.f32 %v1890, %v1892
        %v1894 = vadd.f32 %v1890, %v1893
        %vm1895 = vweird.f32 %v1844
        %vm1896 = vweird.f32 %v1890
        %vm1897 = vmor %vm1895, %vm1896
        %v1898 = vsel %vm1897, %v1890, %v1894
        %v1899 = vand.u32 2147483647, %v1844
        %vm1900 = vcmp.eq.f32.partialorder %v1899, 8.507059e+37
        %v1901 = vand.u32 %v1844, 2147483648
        %v1902 = vor.u32 1.1754944e-38, %v1901
        %v1903 = vsel %vm1900, %v1902, %v1898
        %v1904 = vmul.f32 1.0, %v1903
        %1905 = vst [vmem:[%s287] sm:$0xff] %v1859
        %1906 = vst [vmem:[%s287 + $0x8] sm:$0xff] %v1874
        %1907 = vst [vmem:[%s287 + $0x10] sm:$0xff] %v1889
        %1908 = vst [vmem:[%s287 + $0x18] sm:$0xff] %v1904
        %p1909 = scmp.lt.s32.totalorder %s19, 1
        %s1910 = scalar_select %p1909, %s19, 1
        %s1911 = smul.addr %s1910, 4
        %s1912 = smul.addr %s1911, 8
        %s1913 = scalar_lea.vmem %s5, %s1912
        // Predicated region
        $region57: #{disp_unpack_forward.1} parent=39 // pred_check
          %p1914 = pneg %p147
        $region58: #{disp_unpack_forward.1} parent=39 // pred_check_branch
          %1916 = sbr.rel (%p1914) target = $region60
        $region59: #{disp_unpack_forward.1} parent=39 // pred_region
          _
        $region60: #{disp_unpack_forward.1} parent=39 // pred_fallthru
          _
      $region40: #{disp_unpack_forward.1} parent=5 // pred_fallthru
        _
      %p1917 = scmp.le.s32.totalorder 2, %s14
      // Predicated region
      $region61: #{disp_unpack_forward.1} parent=5 // pred_check
        %p1918 = pneg %p1917
      $region62: #{disp_unpack_forward.1} parent=5 // pred_check_branch
        %1920 = sbr.rel (%p1918) target = $region64
      $region63: #{disp_unpack_forward.1} parent=5 // pred_region
        %s1921 = ssub.s32 %s14, 2
        // Predicated region
        $region65: #{disp_unpack_forward.1} parent=63 // pred_check
          %p1922 = pneg %p153
        $region66: #{disp_unpack_forward.1} parent=63 // pred_check_branch
          %1924 = sbr.rel (%p1922) target = $region68
        $region67: #{disp_unpack_forward.1} parent=63 // pred_region
          %p1925 = scmp.lt.s32.totalorder %s20, 1
          %s1926 = scalar_select %p1925, %s20, 1
          %s1927 = smul.addr %s1926, 4
          %s1928 = smul.addr %s1927, 8
          %s1929 = scalar_lea.vmem %s5, %s1928
        $region68: #{disp_unpack_forward.1} parent=63 // pred_fallthru
          _
      $region64: #{disp_unpack_forward.1} parent=5 // pred_fallthru
        _
    $region6: #{disp_unpack_forward.1} parent=1 // loop_footer
      %s18 = sadd.s32 1, %s14
    $region7: #{disp_unpack_forward.1} parent=1 // loop_footer_branch
      %13 = sbr.rel target = $region3
    $region8: #{disp_unpack_forward.1} parent=1 // loop_exit
      _
    %1930 = vsyncpa [#allocation4], 1
    %s1931 = scalar_lea.sflag [#allocation4], 1
    %1932 = vsyncpa %s1931, 1
    %1933 = vsyncpa [#allocation6], 1
    %1934 = vsyncpa [#allocation9], 1

</llo_original>
